<compile_context>
chip_gen: v5e
topology: v5e:2x2
jax: 0.10.0
libtpu: 0.0.40
codegen_flags: <defaults>
</compile_context>

<pallas_src>
import jax
import jax.numpy as jnp
from jax import lax
from jax.experimental import pallas as pl
from jax.experimental.pallas import tpu as pltpu


def bottleneck_kernel(x_ref, w1_ref, b1_ref, w2_ref, b2_ref, w3_ref, b3_ref,
                      o_ref, pad_ref):
    """One batch element per grid step; all channel contractions in bf16 on the MXU."""
    _, H, W, Cin = x_ref.shape
    width = w1_ref.shape[1]
    Cout = w3_ref.shape[1]

    x = x_ref[0]                                    # (H, W, Cin) f32
    xf = x.reshape(H * W, Cin)                      # kept in f32 for the residual add

    # ---- conv1x1 (BN1 scale pre-folded into w1) + bias + ReLU -----------------------
    o1 = jnp.dot(xf.astype(jnp.bfloat16), w1_ref[...],
                 preferred_element_type=jnp.float32)
    o1 = jnp.maximum(o1 + b1_ref[...], 0.0)         # (H*W, width) f32

    # ---- conv3x3 (stride=1, pad=1), BN2 scale pre-folded ----------------------------
    # Stage o1 once through an (H+2, W+2) padded VMEM scratch.  Only the two H-halo
    # rows are rewritten each step; the halo columns are never written — the two taps
    # that would read them mask those positions with an iota compare instead, so no
    # guaranteed-zero state has to survive across grid steps (megacore-safe).
    zrow = jnp.zeros((W + 2, width), jnp.float32)
    pad_ref[0] = zrow
    pad_ref[H + 1] = zrow
    pad_ref[1:H + 1, 1:W + 1, :] = o1.reshape(H, W, width)

    # One read per dw tap (3 reads, two sublane-misaligned) instead of nine misaligned
    # slice+reshape reads; the dh taps below are free major-axis value slices.
    lv = pad_ref[:, 0:W, :]                         # tap dw=0 -> o1[h, w-1]
    cv = pad_ref[:, 1:W + 1, :]                     # tap dw=1 -> o1[h, w]
    rv = pad_ref[:, 2:W + 2, :]                     # tap dw=2 -> o1[h, w+1]
    wi = lax.broadcasted_iota(jnp.int32, (H + 2, W, width), 1)
    lv = jnp.where(wi >= 1, lv, 0.0)                # zero the w == 0 boundary
    rv = jnp.where(wi <= W - 2, rv, 0.0)            # zero the w == W-1 boundary
    taps = (lv, cv, rv)

    acc = None
    for dh in range(3):
        for dw in range(3):
            a = taps[dw][dh:dh + H].reshape(H * W, width).astype(jnp.bfloat16)
            d = jnp.dot(a, w2_ref[dh, dw], preferred_element_type=jnp.float32)
            acc = d if acc is None else acc + d
    o2 = jnp.maximum(acc + b2_ref[...], 0.0)        # (H*W, width) f32

    # ---- conv1x1 (BN3 scale pre-folded) + bias --------------------------------------
    o3 = jnp.dot(o2.astype(jnp.bfloat16), w3_ref[...],
                 preferred_element_type=jnp.float32) + b3_ref[...]

    # ---- identity residual + ReLU ---------------------------------------------------
    o_ref[0] = jnp.maximum(o3 + xf, 0.0).reshape(H, W, Cout)


def bottleneck_pallas(x_nhwc, w1, b1, w2, b2, w3, b3):
    N, H, W, Cin = x_nhwc.shape
    width = w1.shape[1]
    Cout = w3.shape[1]
    # Identity residual (downsample=None) requires matching channel counts.
    assert Cin == Cout, "identity residual needs inplanes == planes * expansion"

    def full(shape):
        return pl.BlockSpec(shape, lambda n: (0,) * len(shape))

    grid_spec = pltpu.PrefetchScalarGridSpec(
        num_scalar_prefetch=0,
        grid=(N,),
        in_specs=[
            pl.BlockSpec((1, H, W, Cin), lambda n: (n, 0, 0, 0)),
            full((Cin, width)), full((1, width)),
            full((3, 3, width, width)), full((1, width)),
            full((width, Cout)), full((1, Cout)),
        ],
        out_specs=pl.BlockSpec((1, H, W, Cout), lambda n: (n, 0, 0, 0)),
        scratch_shapes=[pltpu.VMEM((H + 2, W + 2, width), jnp.float32)],
    )
    return pl.pallas_call(
        bottleneck_kernel,
        out_shape=jax.ShapeDtypeStruct((N, H, W, Cout), jnp.float32),
        grid_spec=grid_spec,
        compiler_params=pltpu.CompilerParams(
            dimension_semantics=("parallel",),
            # Sized for full-image blocks at small ResNet stages; leaves headroom under
            # v7x's 64 MiB physical VMEM and is well under v5e/v6e's 128 MiB.
            vmem_limit_bytes=48 * 1024 * 1024,
        ),
    )(x_nhwc, w1, b1, w2, b2, w3, b3)


def fold_bn(gamma, beta, mean, var, eps=1e-5):
    scale = gamma / jnp.sqrt(var + eps)
    bias = beta - mean * scale
    return scale, bias


@jax.jit
def bottleneck_forward(x_nchw, dom_id, params):
    """Matches Bottleneck.forward((x, dom_id)) -> (out, dom_id) in eval mode."""
    x = jnp.transpose(x_nchw, (0, 2, 3, 1)).astype(jnp.float32)    # NCHW -> NHWC

    # conv weights: PyTorch OIHW -> (Cin, Cout) / HWIO
    w1 = jnp.transpose(params["conv1_w"][:, :, 0, 0], (1, 0))       # (Cin, width)
    w2 = jnp.transpose(params["conv2_w"], (2, 3, 1, 0))             # (3, 3, width, width)
    w3 = jnp.transpose(params["conv3_w"][:, :, 0, 0], (1, 0))       # (width, Cout)

    # Domain-conditioned BN (inference stats) folded to scale/bias; scales are folded
    # into the conv output channels so the kernel only adds biases, and the matmul
    # weights are cast to bf16 (MXU-native; accumulation stays f32 in the kernel).
    s1, b1 = fold_bn(params["bn1_g"][dom_id], params["bn1_b"][dom_id],
                     params["bn1_m"][dom_id], params["bn1_v"][dom_id])
    s2, b2 = fold_bn(params["bn2_g"][dom_id], params["bn2_b"][dom_id],
                     params["bn2_m"][dom_id], params["bn2_v"][dom_id])
    s3, b3 = fold_bn(params["bn3_g"][dom_id], params["bn3_b"][dom_id],
                     params["bn3_m"][dom_id], params["bn3_v"][dom_id])
    w1f = (w1 * s1[None, :]).astype(jnp.bfloat16)
    w2f = (w2 * s2[None, None, None, :]).astype(jnp.bfloat16)
    w3f = (w3 * s3[None, :]).astype(jnp.bfloat16)

    out_nhwc = bottleneck_pallas(x, w1f, b1[None, :], w2f, b2[None, :],
                                 w3f, b3[None, :])
    out = jnp.transpose(out_nhwc, (0, 3, 1, 2))                     # NHWC -> NCHW
    return out, dom_id


def reference_forward(x_nchw, dom_id, params):
    """Pure-JAX reference with the same numerics (bf16 matmuls, f32 accumulation)."""
    x = jnp.transpose(x_nchw, (0, 2, 3, 1)).astype(jnp.float32)
    w1 = jnp.transpose(params["conv1_w"][:, :, 0, 0], (1, 0))
    w2 = jnp.transpose(params["conv2_w"], (2, 3, 1, 0))
    w3 = jnp.transpose(params["conv3_w"][:, :, 0, 0], (1, 0))
    s1, b1 = fold_bn(params["bn1_g"][dom_id], params["bn1_b"][dom_id],
                     params["bn1_m"][dom_id], params["bn1_v"][dom_id])
    s2, b2 = fold_bn(params["bn2_g"][dom_id], params["bn2_b"][dom_id],
                     params["bn2_m"][dom_id], params["bn2_v"][dom_id])
    s3, b3 = fold_bn(params["bn3_g"][dom_id], params["bn3_b"][dom_id],
                     params["bn3_m"][dom_id], params["bn3_v"][dom_id])
    w1f = (w1 * s1[None, :]).astype(jnp.bfloat16)
    w2f = (w2 * s2[None, None, None, :]).astype(jnp.bfloat16)
    w3f = (w3 * s3[None, :]).astype(jnp.bfloat16)

    o = jnp.einsum("nhwc,cd->nhwd", x.astype(jnp.bfloat16), w1f,
                   preferred_element_type=jnp.float32)
    o = jnp.maximum(o + b1, 0.0)
    o = lax.conv_general_dilated(o.astype(jnp.bfloat16), w2f, (1, 1), "SAME",
                                 dimension_numbers=("NHWC", "HWIO", "NHWC"),
                                 preferred_element_type=jnp.float32)
    o = jnp.maximum(o + b2, 0.0)
    o = jnp.einsum("nhwc,cd->nhwd", o.astype(jnp.bfloat16), w3f,
                   preferred_element_type=jnp.float32)
    o = o + b3
    o = jnp.maximum(o + x, 0.0)
    return jnp.transpose(o, (0, 3, 1, 2)), dom_id


if __name__ == "__main__":
    # Small shapes: planes=4 -> width=4, expansion=4 -> out channels 16; inplanes=16
    # so downsample=None is valid (identity add); stride=1, groups=1, dilation=1.
    N, inplanes, planes, H, W = 2, 16, 4, 16, 16
    width = planes                 # base_width=64, groups=1
    cout = planes * 4
    n_domains = 2

    key = jax.random.PRNGKey(0)
    ks = jax.random.split(key, 16)
    params = {
        "conv1_w": 0.1 * jax.random.normal(ks[0], (width, inplanes, 1, 1), jnp.float32),
        "conv2_w": 0.1 * jax.random.normal(ks[1], (width, width, 3, 3), jnp.float32),
        "conv3_w": 0.1 * jax.random.normal(ks[2], (cout, width, 1, 1), jnp.float32),
        "bn1_g": 1.0 + 0.1 * jax.random.normal(ks[3], (n_domains, width), jnp.float32),
        "bn1_b": 0.1 * jax.random.normal(ks[4], (n_domains, width), jnp.float32),
        "bn1_m": 0.1 * jax.random.normal(ks[5], (n_domains, width), jnp.float32),
        "bn1_v": 1.0 + 0.1 * jax.random.uniform(ks[6], (n_domains, width), jnp.float32),
        "bn2_g": 1.0 + 0.1 * jax.random.normal(ks[7], (n_domains, width), jnp.float32),
        "bn2_b": 0.1 * jax.random.normal(ks[8], (n_domains, width), jnp.float32),
        "bn2_m": 0.1 * jax.random.normal(ks[9], (n_domains, width), jnp.float32),
        "bn2_v": 1.0 + 0.1 * jax.random.uniform(ks[10], (n_domains, width), jnp.float32),
        "bn3_g": 1.0 + 0.1 * jax.random.normal(ks[11], (n_domains, cout), jnp.float32),
        "bn3_b": 0.1 * jax.random.normal(ks[12], (n_domains, cout), jnp.float32),
        "bn3_m": 0.1 * jax.random.normal(ks[13], (n_domains, cout), jnp.float32),
        "bn3_v": 1.0 + 0.1 * jax.random.uniform(ks[14], (n_domains, cout), jnp.float32),
    }

    x = jax.random.normal(ks[15], (N, inplanes, H, W), jnp.float32)   # NCHW like PyTorch
    dom_id = jnp.int32(1)

    out, dom_out = bottleneck_forward(x, dom_id, params)
    out = jax.block_until_ready(out)

    ref, _ = reference_forward(x, dom_id, params)
    assert out.shape == (N, cout, H, W)
    assert int(dom_out) == 1
    assert jnp.allclose(out, ref, rtol=5e-3, atol=5e-3), "mismatch vs reference"

    print("KERNEL_OK")
</pallas_src>

<mosaic_0001>
module attributes {stable_mosaic.version = 11 : i64} {
  func.func @bottleneck_kernel(%arg0: i32, %arg1: memref<1x16x16x16xf32, #tpu.memory_space<vmem>>, %arg2: memref<16x4xbf16, #tpu.memory_space<vmem>>, %arg3: memref<1x4xf32, #tpu.memory_space<vmem>>, %arg4: memref<3x3x4x4xbf16, #tpu.memory_space<vmem>>, %arg5: memref<1x4xf32, #tpu.memory_space<vmem>>, %arg6: memref<4x16xbf16, #tpu.memory_space<vmem>>, %arg7: memref<1x16xf32, #tpu.memory_space<vmem>>, %arg8: memref<1x16x16x16xf32, #tpu.memory_space<vmem>>, %arg9: memref<18x18x4xf32, #tpu.memory_space<vmem>>) attributes {dimension_semantics = [#tpu.dimension_semantics<parallel>], iteration_bounds = array<i64: 2>, scalar_prefetch = 0 : i64, scratch_operands = 1 : i64, tpu.core_type = #tpu.core_type<tc>, window_params = [{transform_indices = @transform_0, window_bounds = array<i64: 1, 16, 16, 16>}, {pipeline_mode = #tpu.pipeline_mode<synchronous>, transform_indices = @transform_1, window_bounds = array<i64: 16, 4>}, {pipeline_mode = #tpu.pipeline_mode<synchronous>, transform_indices = @transform_2, window_bounds = array<i64: 1, 4>}, {pipeline_mode = #tpu.pipeline_mode<synchronous>, transform_indices = @transform_3, window_bounds = array<i64: 3, 3, 4, 4>}, {pipeline_mode = #tpu.pipeline_mode<synchronous>, transform_indices = @transform_4, window_bounds = array<i64: 1, 4>}, {pipeline_mode = #tpu.pipeline_mode<synchronous>, transform_indices = @transform_5, window_bounds = array<i64: 4, 16>}, {pipeline_mode = #tpu.pipeline_mode<synchronous>, transform_indices = @transform_6, window_bounds = array<i64: 1, 16>}, {transform_indices = @transform_7, window_bounds = array<i64: 1, 16, 16, 16>}]} {
    %c0 = arith.constant 0 : index
    %c0_0 = arith.constant 0 : index
    %c0_1 = arith.constant 0 : index
    %c0_2 = arith.constant 0 : index
    %0 = vector.load %arg1[%c0, %c0_0, %c0_1, %c0_2] : memref<1x16x16x16xf32, #tpu.memory_space<vmem>>, vector<1x16x16x16xf32>
    %1 = vector.shape_cast %0 : vector<1x16x16x16xf32> to vector<16x16x16xf32>
    %2 = vector.shape_cast %1 : vector<16x16x16xf32> to vector<256x16xf32>
    %3 = arith.truncf %2 : vector<256x16xf32> to vector<256x16xbf16>
    %c0_3 = arith.constant 0 : index
    %c0_4 = arith.constant 0 : index
    %4 = vector.load %arg2[%c0_3, %c0_4] : memref<16x4xbf16, #tpu.memory_space<vmem>>, vector<16x4xbf16>
    %cst = arith.constant dense<0.000000e+00> : vector<256x4xf32>
    %5 = tpu.matmul %3, %4, %cst {dimension_numbers = #tpu.dot_dimension_numbers<[1], [0], [0], [1], [0, 0, 1, 1], [], []>} : vector<256x16xbf16>, vector<16x4xbf16>, vector<256x4xf32> -> vector<256x4xf32>
    %c0_5 = arith.constant 0 : index
    %c0_6 = arith.constant 0 : index
    %6 = vector.load %arg3[%c0_5, %c0_6] : memref<1x4xf32, #tpu.memory_space<vmem>>, vector<1x4xf32>
    %7 = vector.broadcast %6 : vector<1x4xf32> to vector<256x4xf32>
    %8 = arith.addf %5, %7 : vector<256x4xf32>
    %cst_7 = arith.constant 0.000000e+00 : f32
    %9 = vector.broadcast %cst_7 : f32 to vector<256x4xf32>
    %10 = arith.maximumf %8, %9 : vector<256x4xf32>
    %cst_8 = arith.constant 0.000000e+00 : f32
    %11 = vector.broadcast %cst_8 : f32 to vector<18x4xf32>
    %c0_9 = arith.constant 0 : index
    %c0_10 = arith.constant 0 : index
    %c0_11 = arith.constant 0 : index
    %12 = vector.load %arg9[%c0_9, %c0_10, %c0_11] : memref<18x18x4xf32, #tpu.memory_space<vmem>>, vector<1x18x4xf32>
    %13 = vector.shape_cast %12 : vector<1x18x4xf32> to vector<18x4xf32>
    %14 = vector.shape_cast %11 : vector<18x4xf32> to vector<1x18x4xf32>
    tpu.vector_store %arg9[%c0_9, %c0_10, %c0_11], %14 {strides = array<i32>} : memref<18x18x4xf32, #tpu.memory_space<vmem>>, vector<1x18x4xf32>,
    %c17 = arith.constant 17 : index
    %c0_12 = arith.constant 0 : index
    %c0_13 = arith.constant 0 : index
    %15 = vector.load %arg9[%c17, %c0_12, %c0_13] : memref<18x18x4xf32, #tpu.memory_space<vmem>>, vector<1x18x4xf32>
    %16 = vector.shape_cast %15 : vector<1x18x4xf32> to vector<18x4xf32>
    %17 = vector.shape_cast %11 : vector<18x4xf32> to vector<1x18x4xf32>
    tpu.vector_store %arg9[%c17, %c0_12, %c0_13], %17 {strides = array<i32>} : memref<18x18x4xf32, #tpu.memory_space<vmem>>, vector<1x18x4xf32>,
    %18 = vector.shape_cast %10 : vector<256x4xf32> to vector<16x16x4xf32>
    %c1 = arith.constant 1 : index
    %c1_14 = arith.constant 1 : index
    %c0_15 = arith.constant 0 : index
    %19 = vector.load %arg9[%c1, %c1_14, %c0_15] : memref<18x18x4xf32, #tpu.memory_space<vmem>>, vector<16x16x4xf32>
    tpu.vector_store %arg9[%c1, %c1_14, %c0_15], %18 {strides = array<i32>} : memref<18x18x4xf32, #tpu.memory_space<vmem>>, vector<16x16x4xf32>,
    %c0_16 = arith.constant 0 : index
    %c0_17 = arith.constant 0 : index
    %c0_18 = arith.constant 0 : index
    %20 = vector.load %arg9[%c0_16, %c0_17, %c0_18] : memref<18x18x4xf32, #tpu.memory_space<vmem>>, vector<18x16x4xf32>
    %c0_19 = arith.constant 0 : index
    %c1_20 = arith.constant 1 : index
    %c0_21 = arith.constant 0 : index
    %21 = vector.load %arg9[%c0_19, %c1_20, %c0_21] : memref<18x18x4xf32, #tpu.memory_space<vmem>>, vector<18x16x4xf32>
    %c0_22 = arith.constant 0 : index
    %c2 = arith.constant 2 : index
    %c0_23 = arith.constant 0 : index
    %22 = vector.load %arg9[%c0_22, %c2, %c0_23] : memref<18x18x4xf32, #tpu.memory_space<vmem>>, vector<18x16x4xf32>
    %23 = tpu.iota {dimensions = array<i32: 1>} : vector<18x16x4xi32>
    %c1_i32 = arith.constant 1 : i32
    %24 = vector.broadcast %c1_i32 : i32 to vector<18x16x4xi32>
    %25 = arith.cmpi sge, %23, %24 : vector<18x16x4xi32>
    %cst_24 = arith.constant 0.000000e+00 : f32
    %26 = vector.broadcast %cst_24 : f32 to vector<18x16x4xf32>
    %27 = arith.select %25, %20, %26 : vector<18x16x4xi1>, vector<18x16x4xf32>
    %c14_i32 = arith.constant 14 : i32
    %28 = vector.broadcast %c14_i32 : i32 to vector<18x16x4xi32>
    %29 = arith.cmpi sle, %23, %28 : vector<18x16x4xi32>
    %cst_25 = arith.constant 0.000000e+00 : f32
    %30 = vector.broadcast %cst_25 : f32 to vector<18x16x4xf32>
    %31 = arith.select %29, %22, %30 : vector<18x16x4xi1>, vector<18x16x4xf32>
    %32 = vector.extract_strided_slice %27 {offsets = [0, 0, 0], sizes = [16, 16, 4], strides = [1, 1, 1]} : vector<18x16x4xf32> to vector<16x16x4xf32>
    %33 = vector.shape_cast %32 : vector<16x16x4xf32> to vector<256x4xf32>
    %34 = arith.truncf %33 : vector<256x4xf32> to vector<256x4xbf16>
    %c0_26 = arith.constant 0 : index
    %c0_27 = arith.constant 0 : index
    %c0_28 = arith.constant 0 : index
    %c0_29 = arith.constant 0 : index
    %35 = vector.load %arg4[%c0_26, %c0_27, %c0_28, %c0_29] : memref<3x3x4x4xbf16, #tpu.memory_space<vmem>>, vector<1x1x4x4xbf16>
    %36 = vector.shape_cast %35 : vector<1x1x4x4xbf16> to vector<4x4xbf16>
    %cst_30 = arith.constant dense<0.000000e+00> : vector<256x4xf32>
    %37 = tpu.matmul %34, %36, %cst_30 {dimension_numbers = #tpu.dot_dimension_numbers<[1], [0], [0], [1], [0, 0, 1, 1], [], []>} : vector<256x4xbf16>, vector<4x4xbf16>, vector<256x4xf32> -> vector<256x4xf32>
    %38 = vector.extract_strided_slice %21 {offsets = [0, 0, 0], sizes = [16, 16, 4], strides = [1, 1, 1]} : vector<18x16x4xf32> to vector<16x16x4xf32>
    %39 = vector.shape_cast %38 : vector<16x16x4xf32> to vector<256x4xf32>
    %40 = arith.truncf %39 : vector<256x4xf32> to vector<256x4xbf16>
    %c0_31 = arith.constant 0 : index
    %c1_32 = arith.constant 1 : index
    %c0_33 = arith.constant 0 : index
    %c0_34 = arith.constant 0 : index
    %41 = vector.load %arg4[%c0_31, %c1_32, %c0_33, %c0_34] : memref<3x3x4x4xbf16, #tpu.memory_space<vmem>>, vector<1x1x4x4xbf16>
    %42 = vector.shape_cast %41 : vector<1x1x4x4xbf16> to vector<4x4xbf16>
    %cst_35 = arith.constant dense<0.000000e+00> : vector<256x4xf32>
    %43 = tpu.matmul %40, %42, %cst_35 {dimension_numbers = #tpu.dot_dimension_numbers<[1], [0], [0], [1], [0, 0, 1, 1], [], []>} : vector<256x4xbf16>, vector<4x4xbf16>, vector<256x4xf32> -> vector<256x4xf32>
    %44 = arith.addf %37, %43 : vector<256x4xf32>
    %45 = vector.extract_strided_slice %31 {offsets = [0, 0, 0], sizes = [16, 16, 4], strides = [1, 1, 1]} : vector<18x16x4xf32> to vector<16x16x4xf32>
    %46 = vector.shape_cast %45 : vector<16x16x4xf32> to vector<256x4xf32>
    %47 = arith.truncf %46 : vector<256x4xf32> to vector<256x4xbf16>
    %c0_36 = arith.constant 0 : index
    %c2_37 = arith.constant 2 : index
    %c0_38 = arith.constant 0 : index
    %c0_39 = arith.constant 0 : index
    %48 = vector.load %arg4[%c0_36, %c2_37, %c0_38, %c0_39] : memref<3x3x4x4xbf16, #tpu.memory_space<vmem>>, vector<1x1x4x4xbf16>
    %49 = vector.shape_cast %48 : vector<1x1x4x4xbf16> to vector<4x4xbf16>
    %cst_40 = arith.constant dense<0.000000e+00> : vector<256x4xf32>
    %50 = tpu.matmul %47, %49, %cst_40 {dimension_numbers = #tpu.dot_dimension_numbers<[1], [0], [0], [1], [0, 0, 1, 1], [], []>} : vector<256x4xbf16>, vector<4x4xbf16>, vector<256x4xf32> -> vector<256x4xf32>
    %51 = arith.addf %44, %50 : vector<256x4xf32>
    %52 = vector.extract_strided_slice %27 {offsets = [1, 0, 0], sizes = [16, 16, 4], strides = [1, 1, 1]} : vector<18x16x4xf32> to vector<16x16x4xf32>
    %53 = vector.shape_cast %52 : vector<16x16x4xf32> to vector<256x4xf32>
    %54 = arith.truncf %53 : vector<256x4xf32> to vector<256x4xbf16>
    %c1_41 = arith.constant 1 : index
    %c0_42 = arith.constant 0 : index
    %c0_43 = arith.constant 0 : index
    %c0_44 = arith.constant 0 : index
    %55 = vector.load %arg4[%c1_41, %c0_42, %c0_43, %c0_44] : memref<3x3x4x4xbf16, #tpu.memory_space<vmem>>, vector<1x1x4x4xbf16>
    %56 = vector.shape_cast %55 : vector<1x1x4x4xbf16> to vector<4x4xbf16>
    %cst_45 = arith.constant dense<0.000000e+00> : vector<256x4xf32>
    %57 = tpu.matmul %54, %56, %cst_45 {dimension_numbers = #tpu.dot_dimension_numbers<[1], [0], [0], [1], [0, 0, 1, 1], [], []>} : vector<256x4xbf16>, vector<4x4xbf16>, vector<256x4xf32> -> vector<256x4xf32>
    %58 = arith.addf %51, %57 : vector<256x4xf32>
    %59 = vector.extract_strided_slice %21 {offsets = [1, 0, 0], sizes = [16, 16, 4], strides = [1, 1, 1]} : vector<18x16x4xf32> to vector<16x16x4xf32>
    %60 = vector.shape_cast %59 : vector<16x16x4xf32> to vector<256x4xf32>
    %61 = arith.truncf %60 : vector<256x4xf32> to vector<256x4xbf16>
    %c1_46 = arith.constant 1 : index
    %c1_47 = arith.constant 1 : index
    %c0_48 = arith.constant 0 : index
    %c0_49 = arith.constant 0 : index
    %62 = vector.load %arg4[%c1_46, %c1_47, %c0_48, %c0_49] : memref<3x3x4x4xbf16, #tpu.memory_space<vmem>>, vector<1x1x4x4xbf16>
    %63 = vector.shape_cast %62 : vector<1x1x4x4xbf16> to vector<4x4xbf16>
    %cst_50 = arith.constant dense<0.000000e+00> : vector<256x4xf32>
    %64 = tpu.matmul %61, %63, %cst_50 {dimension_numbers = #tpu.dot_dimension_numbers<[1], [0], [0], [1], [0, 0, 1, 1], [], []>} : vector<256x4xbf16>, vector<4x4xbf16>, vector<256x4xf32> -> vector<256x4xf32>
    %65 = arith.addf %58, %64 : vector<256x4xf32>
    %66 = vector.extract_strided_slice %31 {offsets = [1, 0, 0], sizes = [16, 16, 4], strides = [1, 1, 1]} : vector<18x16x4xf32> to vector<16x16x4xf32>
    %67 = vector.shape_cast %66 : vector<16x16x4xf32> to vector<256x4xf32>
    %68 = arith.truncf %67 : vector<256x4xf32> to vector<256x4xbf16>
    %c1_51 = arith.constant 1 : index
    %c2_52 = arith.constant 2 : index
    %c0_53 = arith.constant 0 : index
    %c0_54 = arith.constant 0 : index
    %69 = vector.load %arg4[%c1_51, %c2_52, %c0_53, %c0_54] : memref<3x3x4x4xbf16, #tpu.memory_space<vmem>>, vector<1x1x4x4xbf16>
    %70 = vector.shape_cast %69 : vector<1x1x4x4xbf16> to vector<4x4xbf16>
    %cst_55 = arith.constant dense<0.000000e+00> : vector<256x4xf32>
    %71 = tpu.matmul %68, %70, %cst_55 {dimension_numbers = #tpu.dot_dimension_numbers<[1], [0], [0], [1], [0, 0, 1, 1], [], []>} : vector<256x4xbf16>, vector<4x4xbf16>, vector<256x4xf32> -> vector<256x4xf32>
    %72 = arith.addf %65, %71 : vector<256x4xf32>
    %73 = vector.extract_strided_slice %27 {offsets = [2, 0, 0], sizes = [16, 16, 4], strides = [1, 1, 1]} : vector<18x16x4xf32> to vector<16x16x4xf32>
    %74 = vector.shape_cast %73 : vector<16x16x4xf32> to vector<256x4xf32>
    %75 = arith.truncf %74 : vector<256x4xf32> to vector<256x4xbf16>
    %c2_56 = arith.constant 2 : index
    %c0_57 = arith.constant 0 : index
    %c0_58 = arith.constant 0 : index
    %c0_59 = arith.constant 0 : index
    %76 = vector.load %arg4[%c2_56, %c0_57, %c0_58, %c0_59] : memref<3x3x4x4xbf16, #tpu.memory_space<vmem>>, vector<1x1x4x4xbf16>
    %77 = vector.shape_cast %76 : vector<1x1x4x4xbf16> to vector<4x4xbf16>
    %cst_60 = arith.constant dense<0.000000e+00> : vector<256x4xf32>
    %78 = tpu.matmul %75, %77, %cst_60 {dimension_numbers = #tpu.dot_dimension_numbers<[1], [0], [0], [1], [0, 0, 1, 1], [], []>} : vector<256x4xbf16>, vector<4x4xbf16>, vector<256x4xf32> -> vector<256x4xf32>
    %79 = arith.addf %72, %78 : vector<256x4xf32>
    %80 = vector.extract_strided_slice %21 {offsets = [2, 0, 0], sizes = [16, 16, 4], strides = [1, 1, 1]} : vector<18x16x4xf32> to vector<16x16x4xf32>
    %81 = vector.shape_cast %80 : vector<16x16x4xf32> to vector<256x4xf32>
    %82 = arith.truncf %81 : vector<256x4xf32> to vector<256x4xbf16>
    %c2_61 = arith.constant 2 : index
    %c1_62 = arith.constant 1 : index
    %c0_63 = arith.constant 0 : index
    %c0_64 = arith.constant 0 : index
    %83 = vector.load %arg4[%c2_61, %c1_62, %c0_63, %c0_64] : memref<3x3x4x4xbf16, #tpu.memory_space<vmem>>, vector<1x1x4x4xbf16>
    %84 = vector.shape_cast %83 : vector<1x1x4x4xbf16> to vector<4x4xbf16>
    %cst_65 = arith.constant dense<0.000000e+00> : vector<256x4xf32>
    %85 = tpu.matmul %82, %84, %cst_65 {dimension_numbers = #tpu.dot_dimension_numbers<[1], [0], [0], [1], [0, 0, 1, 1], [], []>} : vector<256x4xbf16>, vector<4x4xbf16>, vector<256x4xf32> -> vector<256x4xf32>
    %86 = arith.addf %79, %85 : vector<256x4xf32>
    %87 = vector.extract_strided_slice %31 {offsets = [2, 0, 0], sizes = [16, 16, 4], strides = [1, 1, 1]} : vector<18x16x4xf32> to vector<16x16x4xf32>
    %88 = vector.shape_cast %87 : vector<16x16x4xf32> to vector<256x4xf32>
    %89 = arith.truncf %88 : vector<256x4xf32> to vector<256x4xbf16>
    %c2_66 = arith.constant 2 : index
    %c2_67 = arith.constant 2 : index
    %c0_68 = arith.constant 0 : index
    %c0_69 = arith.constant 0 : index
    %90 = vector.load %arg4[%c2_66, %c2_67, %c0_68, %c0_69] : memref<3x3x4x4xbf16, #tpu.memory_space<vmem>>, vector<1x1x4x4xbf16>
    %91 = vector.shape_cast %90 : vector<1x1x4x4xbf16> to vector<4x4xbf16>
    %cst_70 = arith.constant dense<0.000000e+00> : vector<256x4xf32>
    %92 = tpu.matmul %89, %91, %cst_70 {dimension_numbers = #tpu.dot_dimension_numbers<[1], [0], [0], [1], [0, 0, 1, 1], [], []>} : vector<256x4xbf16>, vector<4x4xbf16>, vector<256x4xf32> -> vector<256x4xf32>
    %93 = arith.addf %86, %92 : vector<256x4xf32>
    %c0_71 = arith.constant 0 : index
    %c0_72 = arith.constant 0 : index
    %94 = vector.load %arg5[%c0_71, %c0_72] : memref<1x4xf32, #tpu.memory_space<vmem>>, vector<1x4xf32>
    %95 = vector.broadcast %94 : vector<1x4xf32> to vector<256x4xf32>
    %96 = arith.addf %93, %95 : vector<256x4xf32>
    %cst_73 = arith.constant 0.000000e+00 : f32
    %97 = vector.broadcast %cst_73 : f32 to vector<256x4xf32>
    %98 = arith.maximumf %96, %97 : vector<256x4xf32>
    %99 = arith.truncf %98 : vector<256x4xf32> to vector<256x4xbf16>
    %c0_74 = arith.constant 0 : index
    %c0_75 = arith.constant 0 : index
    %100 = vector.load %arg6[%c0_74, %c0_75] : memref<4x16xbf16, #tpu.memory_space<vmem>>, vector<4x16xbf16>
    %cst_76 = arith.constant dense<0.000000e+00> : vector<256x16xf32>
    %101 = tpu.matmul %99, %100, %cst_76 {dimension_numbers = #tpu.dot_dimension_numbers<[1], [0], [0], [1], [0, 0, 1, 1], [], []>} : vector<256x4xbf16>, vector<4x16xbf16>, vector<256x16xf32> -> vector<256x16xf32>
    %c0_77 = arith.constant 0 : index
    %c0_78 = arith.constant 0 : index
    %102 = vector.load %arg7[%c0_77, %c0_78] : memref<1x16xf32, #tpu.memory_space<vmem>>, vector<1x16xf32>
    %103 = vector.broadcast %102 : vector<1x16xf32> to vector<256x16xf32>
    %104 = arith.addf %101, %103 : vector<256x16xf32>
    %105 = arith.addf %104, %2 : vector<256x16xf32>
    %cst_79 = arith.constant 0.000000e+00 : f32
    %106 = vector.broadcast %cst_79 : f32 to vector<256x16xf32>
    %107 = arith.maximumf %105, %106 : vector<256x16xf32>
    %108 = vector.shape_cast %107 : vector<256x16xf32> to vector<16x16x16xf32>
    %c0_80 = arith.constant 0 : index
    %c0_81 = arith.constant 0 : index
    %c0_82 = arith.constant 0 : index
    %c0_83 = arith.constant 0 : index
    %109 = vector.load %arg8[%c0_80, %c0_81, %c0_82, %c0_83] : memref<1x16x16x16xf32, #tpu.memory_space<vmem>>, vector<1x16x16x16xf32>
    %110 = vector.shape_cast %109 : vector<1x16x16x16xf32> to vector<16x16x16xf32>
    %111 = vector.shape_cast %108 : vector<16x16x16xf32> to vector<1x16x16x16xf32>
    tpu.vector_store %arg8[%c0_80, %c0_81, %c0_82, %c0_83], %111 {strides = array<i32>} : memref<1x16x16x16xf32, #tpu.memory_space<vmem>>, vector<1x16x16x16xf32>,
    return
  }
  func.func @transform_0(%arg0: i32) -> (i32, i32, i32, i32) {
    %c0_i32 = arith.constant 0 : i32
    %c0_i32_0 = arith.constant 0 : i32
    %c0_i32_1 = arith.constant 0 : i32
    %c0_i32_2 = arith.constant 0 : i32
    return %arg0, %c0_i32, %c0_i32_0, %c0_i32_1 : i32, i32, i32, i32
  }
  func.func @transform_1(%arg0: i32) -> (i32, i32) {
    %c0_i32 = arith.constant 0 : i32
    %c0_i32_0 = arith.constant 0 : i32
    %c0_i32_1 = arith.constant 0 : i32
    return %c0_i32, %c0_i32_0 : i32, i32
  }
  func.func @transform_2(%arg0: i32) -> (i32, i32) {
    %c0_i32 = arith.constant 0 : i32
    %c0_i32_0 = arith.constant 0 : i32
    %c0_i32_1 = arith.constant 0 : i32
    return %c0_i32, %c0_i32_0 : i32, i32
  }
  func.func @transform_3(%arg0: i32) -> (i32, i32, i32, i32) {
    %c0_i32 = arith.constant 0 : i32
    %c0_i32_0 = arith.constant 0 : i32
    %c0_i32_1 = arith.constant 0 : i32
    %c0_i32_2 = arith.constant 0 : i32
    %c0_i32_3 = arith.constant 0 : i32
    return %c0_i32, %c0_i32_0, %c0_i32_1, %c0_i32_2 : i32, i32, i32, i32
  }
  func.func @transform_4(%arg0: i32) -> (i32, i32) {
    %c0_i32 = arith.constant 0 : i32
    %c0_i32_0 = arith.constant 0 : i32
    %c0_i32_1 = arith.constant 0 : i32
    return %c0_i32, %c0_i32_0 : i32, i32
  }
  func.func @transform_5(%arg0: i32) -> (i32, i32) {
    %c0_i32 = arith.constant 0 : i32
    %c0_i32_0 = arith.constant 0 : i32
    %c0_i32_1 = arith.constant 0 : i32
    return %c0_i32, %c0_i32_0 : i32, i32
  }
  func.func @transform_6(%arg0: i32) -> (i32, i32) {
    %c0_i32 = arith.constant 0 : i32
    %c0_i32_0 = arith.constant 0 : i32
    %c0_i32_1 = arith.constant 0 : i32
    return %c0_i32, %c0_i32_0 : i32, i32
  }
  func.func @transform_7(%arg0: i32) -> (i32, i32, i32, i32) {
    %c0_i32 = arith.constant 0 : i32
    %c0_i32_0 = arith.constant 0 : i32
    %c0_i32_1 = arith.constant 0 : i32
    %c0_i32_2 = arith.constant 0 : i32
    return %arg0, %c0_i32, %c0_i32_0, %c0_i32_1 : i32, i32, i32, i32
  }
}

</mosaic_0001>

<llo_original>
// kernel: bottleneck_forward.1
$region0: #{bottleneck_forward.1}
  #allocation0 [shape = 'u32[]', space=smem, size = 0x4, offset = 0x4, fixed_abs, tag = 'smem constant byte address 0x4 - core index']
  #allocation1 [shape = 'u32[72,128]{1,0:T(1,128)}', space=vmem, size = 0x9000, scoped, tag = 'internal scratch']
  #allocation2 [shape = 'f32[18,18,4]{2,1,0:T(8,128)}', space=vmem, size = 0x36000, scoped, tag = 'scratch operand']
  %s0 = inlined_call_operand.vmem [shape: f32[2,16,16,16], index: 0, kind: input, shape index: {}]
  %s1 = inlined_call_operand.vmem [shape: bf16[16,4], index: 1, kind: input, shape index: {}]
  %s2 = inlined_call_operand.vmem [shape: f32[1,4], index: 2, kind: input, shape index: {}]
  %s3 = inlined_call_operand.vmem [shape: bf16[3,3,4,4], index: 3, kind: input, shape index: {}]
  %s4 = inlined_call_operand.vmem [shape: f32[1,4], index: 4, kind: input, shape index: {}]
  %s5 = inlined_call_operand.vmem [shape: bf16[4,16], index: 5, kind: input, shape index: {}]
  %s6 = inlined_call_operand.vmem [shape: f32[1,16], index: 6, kind: input, shape index: {}]
  %s7 = inlined_call_operand.vmem [shape: f32[2,16,16,16], index: 7, kind: output, shape index: {}]
  %s8 = sld [smem:[#allocation0]]
  $region61: #{bottleneck_forward.1} parent=0
    _
  %s10 = ssub.s32 1, %s8
  %s11 = scalar_select 0, %s10, %s8
  loop: start=0, step=1, limit=4
  $region2: #{bottleneck_forward.1} parent=0 // loop_pre_header
    _
  $region3: #{bottleneck_forward.1} parent=0 // loop_header
    %s13 = sphi 0, %s17
    %p14 = scmp.ge.s32.totalorder %s13, 4
    %s23 = sphi 0, %s25
    %s26 = sphi 0, %s23
    %s27 = sphi 0, %s26
    %s43 = sphi 0, %s27
    %s47 = sphi 0, %s47
    %s49 = sphi 0, %s47
    %s50 = sphi 0, %s49
    %s64 = sphi 0, %s50
    %s68 = sphi 0, %s68
    %s70 = sphi 0, %s68
    %s71 = sphi 0, %s70
    %s85 = sphi 0, %s71
    %s89 = sphi 0, %s89
    %s91 = sphi 0, %s89
    %s92 = sphi 0, %s91
    %s106 = sphi 0, %s92
    %s110 = sphi 0, %s110
    %s112 = sphi 0, %s110
    %s113 = sphi 0, %s112
    %s127 = sphi 0, %s113
    %s131 = sphi 0, %s131
    %s133 = sphi 0, %s131
    %s134 = sphi 0, %s133
    %s148 = sphi 0, %s134
    %s152 = sphi 0, %s152
    %s154 = sphi 0, %s152
    %s155 = sphi 0, %s154
    %s169 = sphi 0, %s155
    %s175 = sphi 0, %s177
    %s178 = sphi 0, %s175
    %s179 = sphi 0, %s178
    %s195 = sphi 0, %s179
  $region4: #{bottleneck_forward.1} parent=0 // loop_header_branch
    %16 = sbr.rel (%p14) target = $region8
  $region5: #{bottleneck_forward.1} parent=0 // loop_body
    %s18 = ssub.s32 %s13, 1
    %s19 = ssub.s32 %s13, 2
    %s20 = sadd.s32 %s13, 1
    %s21 = ssub.s32 %s13, %s20
    %p22 = scmp.eq.s32.totalorder %s21, 0
    %s24 = sadd.s32 %s23, 1
    %s25 = scalar_select %p22, %s23, %s24
    %p28 = pneg %p22
    %p29 = scmp.eq.s32.totalorder %s13, 1
    %p30 = por %p28, %p29
    %p31 = scmp.ne.s32.totalorder %s23, %s26
    %p32 = scmp.eq.s32.totalorder %s13, 0
    %p33 = por %p31, %p32
    %p34 = scmp.ne.s32.totalorder %s23, %s26
    %p35 = scmp.eq.s32.totalorder %s18, 1
    %p36 = por %p34, %p35
    %p37 = scmp.ne.s32.totalorder %s26, %s27
    %p38 = scmp.eq.s32.totalorder %s18, 0
    %p39 = por %p37, %p38
    %p40 = scmp.ne.s32.totalorder %s26, %s27
    %p41 = scmp.eq.s32.totalorder %s19, 1
    %p42 = por %p40, %p41
    %p44 = scmp.ne.s32.totalorder %s27, %s43
    %p45 = scmp.eq.s32.totalorder %s19, 0
    %p46 = por %p44, %p45
    %s48 = sadd.s32 %s47, 1
    %p51 = scmp.eq.s32.totalorder %s13, 1
    %p52 = scmp.ne.s32.totalorder %s47, %s49
    %p53 = scmp.eq.s32.totalorder %s13, 0
    %p54 = por %p52, %p53
    %p55 = scmp.ne.s32.totalorder %s47, %s49
    %p56 = scmp.eq.s32.totalorder %s18, 1
    %p57 = por %p55, %p56
    %p58 = scmp.ne.s32.totalorder %s49, %s50
    %p59 = scmp.eq.s32.totalorder %s18, 0
    %p60 = por %p58, %p59
    %p61 = scmp.ne.s32.totalorder %s49, %s50
    %p62 = scmp.eq.s32.totalorder %s19, 1
    %p63 = por %p61, %p62
    %p65 = scmp.ne.s32.totalorder %s50, %s64
    %p66 = scmp.eq.s32.totalorder %s19, 0
    %p67 = por %p65, %p66
    %s69 = sadd.s32 %s68, 1
    %p72 = scmp.eq.s32.totalorder %s13, 1
    %p73 = scmp.ne.s32.totalorder %s68, %s70
    %p74 = scmp.eq.s32.totalorder %s13, 0
    %p75 = por %p73, %p74
    %p76 = scmp.ne.s32.totalorder %s68, %s70
    %p77 = scmp.eq.s32.totalorder %s18, 1
    %p78 = por %p76, %p77
    %p79 = scmp.ne.s32.totalorder %s70, %s71
    %p80 = scmp.eq.s32.totalorder %s18, 0
    %p81 = por %p79, %p80
    %p82 = scmp.ne.s32.totalorder %s70, %s71
    %p83 = scmp.eq.s32.totalorder %s19, 1
    %p84 = por %p82, %p83
    %p86 = scmp.ne.s32.totalorder %s71, %s85
    %p87 = scmp.eq.s32.totalorder %s19, 0
    %p88 = por %p86, %p87
    %s90 = sadd.s32 %s89, 1
    %p93 = scmp.eq.s32.totalorder %s13, 1
    %p94 = scmp.ne.s32.totalorder %s89, %s91
    %p95 = scmp.eq.s32.totalorder %s13, 0
    %p96 = por %p94, %p95
    %p97 = scmp.ne.s32.totalorder %s89, %s91
    %p98 = scmp.eq.s32.totalorder %s18, 1
    %p99 = por %p97, %p98
    %p100 = scmp.ne.s32.totalorder %s91, %s92
    %p101 = scmp.eq.s32.totalorder %s18, 0
    %p102 = por %p100, %p101
    %p103 = scmp.ne.s32.totalorder %s91, %s92
    %p104 = scmp.eq.s32.totalorder %s19, 1
    %p105 = por %p103, %p104
    %p107 = scmp.ne.s32.totalorder %s92, %s106
    %p108 = scmp.eq.s32.totalorder %s19, 0
    %p109 = por %p107, %p108
    %s111 = sadd.s32 %s110, 1
    %p114 = scmp.eq.s32.totalorder %s13, 1
    %p115 = scmp.ne.s32.totalorder %s110, %s112
    %p116 = scmp.eq.s32.totalorder %s13, 0
    %p117 = por %p115, %p116
    %p118 = scmp.ne.s32.totalorder %s110, %s112
    %p119 = scmp.eq.s32.totalorder %s18, 1
    %p120 = por %p118, %p119
    %p121 = scmp.ne.s32.totalorder %s112, %s113
    %p122 = scmp.eq.s32.totalorder %s18, 0
    %p123 = por %p121, %p122
    %p124 = scmp.ne.s32.totalorder %s112, %s113
    %p125 = scmp.eq.s32.totalorder %s19, 1
    %p126 = por %p124, %p125
    %p128 = scmp.ne.s32.totalorder %s113, %s127
    %p129 = scmp.eq.s32.totalorder %s19, 0
    %p130 = por %p128, %p129
    %s132 = sadd.s32 %s131, 1
    %p135 = scmp.eq.s32.totalorder %s13, 1
    %p136 = scmp.ne.s32.totalorder %s131, %s133
    %p137 = scmp.eq.s32.totalorder %s13, 0
    %p138 = por %p136, %p137
    %p139 = scmp.ne.s32.totalorder %s131, %s133
    %p140 = scmp.eq.s32.totalorder %s18, 1
    %p141 = por %p139, %p140
    %p142 = scmp.ne.s32.totalorder %s133, %s134
    %p143 = scmp.eq.s32.totalorder %s18, 0
    %p144 = por %p142, %p143
    %p145 = scmp.ne.s32.totalorder %s133, %s134
    %p146 = scmp.eq.s32.totalorder %s19, 1
    %p147 = por %p145, %p146
    %p149 = scmp.ne.s32.totalorder %s134, %s148
    %p150 = scmp.eq.s32.totalorder %s19, 0
    %p151 = por %p149, %p150
    %s153 = sadd.s32 %s152, 1
    %p156 = scmp.eq.s32.totalorder %s13, 1
    %p157 = scmp.ne.s32.totalorder %s152, %s154
    %p158 = scmp.eq.s32.totalorder %s13, 0
    %p159 = por %p157, %p158
    %p160 = scmp.ne.s32.totalorder %s152, %s154
    %p161 = scmp.eq.s32.totalorder %s18, 1
    %p162 = por %p160, %p161
    %p163 = scmp.ne.s32.totalorder %s154, %s155
    %p164 = scmp.eq.s32.totalorder %s18, 0
    %p165 = por %p163, %p164
    %p166 = scmp.ne.s32.totalorder %s154, %s155
    %p167 = scmp.eq.s32.totalorder %s19, 1
    %p168 = por %p166, %p167
    %p170 = scmp.ne.s32.totalorder %s155, %s169
    %p171 = scmp.eq.s32.totalorder %s19, 0
    %p172 = por %p170, %p171
    %s173 = ssub.s32 %s13, %s20
    %p174 = scmp.eq.s32.totalorder %s173, 0
    %s176 = sadd.s32 %s175, 1
    %s177 = scalar_select %p174, %s175, %s176
    %p180 = pneg %p174
    %p181 = scmp.eq.s32.totalorder %s13, 1
    %p182 = por %p180, %p181
    %p183 = scmp.ne.s32.totalorder %s175, %s178
    %p184 = scmp.eq.s32.totalorder %s13, 0
    %p185 = por %p183, %p184
    %p186 = scmp.ne.s32.totalorder %s175, %s178
    %p187 = scmp.eq.s32.totalorder %s18, 1
    %p188 = por %p186, %p187
    %p189 = scmp.ne.s32.totalorder %s178, %s179
    %p190 = scmp.eq.s32.totalorder %s18, 0
    %p191 = por %p189, %p190
    %p192 = scmp.ne.s32.totalorder %s178, %s179
    %p193 = scmp.eq.s32.totalorder %s19, 1
    %p194 = por %p192, %p193
    %p196 = scmp.ne.s32.totalorder %s179, %s195
    %p197 = scmp.eq.s32.totalorder %s19, 0
    %p198 = por %p196, %p197
    %p199 = scmp.le.s32.totalorder 1, %s13
    %p200 = scmp.lt.s32.totalorder %s13, 3
    %p201 = pnand %p199, %p200
    %p202 = pneg %p201
    // Predicated region
    $region9: #{bottleneck_forward.1} parent=5 // pred_check
      _
    $region10: #{bottleneck_forward.1} parent=5 // pred_check_branch
      %204 = sbr.rel (%p201) target = $region12
    $region11: #{bottleneck_forward.1} parent=5 // pred_region
      %s205 = ssub.s32 %s13, 1
      // Predicated region
      $region13: #{bottleneck_forward.1} parent=11 // pred_check
        %p206 = pneg %p60
      $region14: #{bottleneck_forward.1} parent=11 // pred_check_branch
        %208 = sbr.rel (%p206) target = $region16
      $region15: #{bottleneck_forward.1} parent=11 // pred_region
        _
      $region16: #{bottleneck_forward.1} parent=11 // pred_fallthru
        _
      // Predicated region
      $region17: #{bottleneck_forward.1} parent=11 // pred_check
        %p209 = pneg %p81
      $region18: #{bottleneck_forward.1} parent=11 // pred_check_branch
        %211 = sbr.rel (%p209) target = $region20
      $region19: #{bottleneck_forward.1} parent=11 // pred_region
        _
      $region20: #{bottleneck_forward.1} parent=11 // pred_fallthru
        _
      // Predicated region
      $region21: #{bottleneck_forward.1} parent=11 // pred_check
        %p212 = pneg %p102
      $region22: #{bottleneck_forward.1} parent=11 // pred_check_branch
        %214 = sbr.rel (%p212) target = $region24
      $region23: #{bottleneck_forward.1} parent=11 // pred_region
        _
      $region24: #{bottleneck_forward.1} parent=11 // pred_fallthru
        _
      // Predicated region
      $region25: #{bottleneck_forward.1} parent=11 // pred_check
        %p215 = pneg %p123
      $region26: #{bottleneck_forward.1} parent=11 // pred_check_branch
        %217 = sbr.rel (%p215) target = $region28
      $region27: #{bottleneck_forward.1} parent=11 // pred_region
        _
      $region28: #{bottleneck_forward.1} parent=11 // pred_fallthru
        _
      // Predicated region
      $region29: #{bottleneck_forward.1} parent=11 // pred_check
        %p218 = pneg %p144
      $region30: #{bottleneck_forward.1} parent=11 // pred_check_branch
        %220 = sbr.rel (%p218) target = $region32
      $region31: #{bottleneck_forward.1} parent=11 // pred_region
        _
      $region32: #{bottleneck_forward.1} parent=11 // pred_fallthru
        _
      // Predicated region
      $region33: #{bottleneck_forward.1} parent=11 // pred_check
        %p221 = pneg %p165
      $region34: #{bottleneck_forward.1} parent=11 // pred_check_branch
        %223 = sbr.rel (%p221) target = $region36
      $region35: #{bottleneck_forward.1} parent=11 // pred_region
        _
      $region36: #{bottleneck_forward.1} parent=11 // pred_fallthru
        _
    $region12: #{bottleneck_forward.1} parent=5 // pred_fallthru
      _
    %p224 = scmp.lt.s32.totalorder %s13, 2
    // Predicated region
    $region37: #{bottleneck_forward.1} parent=5 // pred_check
      %p225 = pneg %p224
    $region38: #{bottleneck_forward.1} parent=5 // pred_check_branch
      %227 = sbr.rel (%p225) target = $region40
    $region39: #{bottleneck_forward.1} parent=5 // pred_region
      // Predicated region
      $region41: #{bottleneck_forward.1} parent=39 // pred_check
        %p228 = pneg %p33
      $region42: #{bottleneck_forward.1} parent=39 // pred_check_branch
        %230 = sbr.rel (%p228) target = $region44
      $region43: #{bottleneck_forward.1} parent=39 // pred_region
        %p231 = scmp.lt.s32.totalorder %s13, 1
        %s232 = scalar_select %p231, %s13, 1
        %s233 = smul.addr %s232, 32
        %s234 = smul.addr %s233, 8
        %s235 = scalar_lea.vmem %s0, %s234
      $region44: #{bottleneck_forward.1} parent=39 // pred_fallthru
        _
    $region40: #{bottleneck_forward.1} parent=5 // pred_fallthru
      _
    %p236 = scmp.le.s32.totalorder 1, %s13
    %p237 = scmp.lt.s32.totalorder %s13, 3
    %p238 = pnand %p236, %p237
    %p239 = pneg %p238
    // Predicated region
    $region45: #{bottleneck_forward.1} parent=5 // pred_check
      _
    $region46: #{bottleneck_forward.1} parent=5 // pred_check_branch
      %241 = sbr.rel (%p238) target = $region48
    $region47: #{bottleneck_forward.1} parent=5 // pred_region
      %s242 = ssub.s32 %s13, 1
      %p243 = scmp.lt.s32.totalorder %s18, 1
      %s244 = scalar_select %p243, %s18, 1
      %s245 = smul.addr %s244, 32
      %s246 = smul.addr %s245, 8
      %s247 = scalar_lea.vmem %s0, %s246
      %p248 = pneg %p39
      %p249 = pneg %p36
      %p250 = pneg %p60
      %p251 = pneg %p57
      %p252 = pneg %p81
      %p253 = pneg %p78
      %p254 = pneg %p102
      %p255 = pneg %p99
      %p256 = pneg %p123
      %p257 = pneg %p120
      %p258 = pneg %p144
      %p259 = pneg %p141
      %p260 = pneg %p165
      %p261 = pneg %p162
      %p262 = pneg %p191
      %p263 = pneg %p188
      %p264 = scmp.lt.s32.totalorder %s18, 1
      %s265 = scalar_select %p264, %s18, 1
      %s266 = smul.addr %s265, 32
      %s267 = smul.addr %s266, 8
      %s268 = scalar_lea.vmem %s7, %s267
      %p269 = scmp.lt.s32.totalorder %s18, 1
      %s270 = scalar_select %p269, %s18, 1
      %s271 = smul.addr %s270, 32
      %s272 = smul.addr %s271, 8
      %s273 = scalar_lea.vmem %s0, %s272
      %p274 = scmp.lt.s32.totalorder %s18, 1
      %s275 = scalar_select %p274, %s18, 1
      %s276 = smul.addr %s275, 32
      %s277 = smul.addr %s276, 8
      %s278 = scalar_lea.vmem %s7, %s277
      %v280 = vld [vmem:[%s273] sm:$0xff]
      %v281 = vld [vmem:[%s273 + $0x8] sm:$0xff]
      %v282 = vld [vmem:[%s273 + $0x10] sm:$0xff]
      %v283 = vld [vmem:[%s273 + $0x18] sm:$0xff]
      %v284 = vld [vmem:[%s273 + $0x20] sm:$0xff]
      %v285 = vld [vmem:[%s273 + $0x28] sm:$0xff]
      %v286 = vld [vmem:[%s273 + $0x30] sm:$0xff]
      %v287 = vld [vmem:[%s273 + $0x38] sm:$0xff]
      %v288 = vld [vmem:[%s273 + $0x40] sm:$0xff]
      %v289 = vld [vmem:[%s273 + $0x48] sm:$0xff]
      %v290 = vld [vmem:[%s273 + $0x50] sm:$0xff]
      %v291 = vld [vmem:[%s273 + $0x58] sm:$0xff]
      %v292 = vld [vmem:[%s273 + $0x60] sm:$0xff]
      %v293 = vld [vmem:[%s273 + $0x68] sm:$0xff]
      %v294 = vld [vmem:[%s273 + $0x70] sm:$0xff]
      %v295 = vld [vmem:[%s273 + $0x78] sm:$0xff]
      %v296 = vld [vmem:[%s273 + $0x80] sm:$0xff]
      %v297 = vld [vmem:[%s273 + $0x88] sm:$0xff]
      %v298 = vld [vmem:[%s273 + $0x90] sm:$0xff]
      %v299 = vld [vmem:[%s273 + $0x98] sm:$0xff]
      %v300 = vld [vmem:[%s273 + $0xa0] sm:$0xff]
      %v301 = vld [vmem:[%s273 + $0xa8] sm:$0xff]
      %v302 = vld [vmem:[%s273 + $0xb0] sm:$0xff]
      %v303 = vld [vmem:[%s273 + $0xb8] sm:$0xff]
      %v304 = vld [vmem:[%s273 + $0xc0] sm:$0xff]
      %v305 = vld [vmem:[%s273 + $0xc8] sm:$0xff]
      %v306 = vld [vmem:[%s273 + $0xd0] sm:$0xff]
      %v307 = vld [vmem:[%s273 + $0xd8] sm:$0xff]
      %v308 = vld [vmem:[%s273 + $0xe0] sm:$0xff]
      %v309 = vld [vmem:[%s273 + $0xe8] sm:$0xff]
      %v310 = vld [vmem:[%s273 + $0xf0] sm:$0xff]
      %v311 = vld [vmem:[%s273 + $0xf8] sm:$0xff]
      %v312 = vpack.c.bf16 %v281, %v280
      %v313 = vpack.c.bf16 %v283, %v282
      %v314 = vpack.c.bf16 %v285, %v284
      %v315 = vpack.c.bf16 %v287, %v286
      %v316 = vpack.c.bf16 %v289, %v288
      %v317 = vpack.c.bf16 %v291, %v290
      %v318 = vpack.c.bf16 %v293, %v292
      %v319 = vpack.c.bf16 %v295, %v294
      %v320 = vpack.c.bf16 %v297, %v296
      %v321 = vpack.c.bf16 %v299, %v298
      %v322 = vpack.c.bf16 %v301, %v300
      %v323 = vpack.c.bf16 %v303, %v302
      %v324 = vpack.c.bf16 %v305, %v304
      %v325 = vpack.c.bf16 %v307, %v306
      %v326 = vpack.c.bf16 %v309, %v308
      %v327 = vpack.c.bf16 %v311, %v310
      %v328 = vld [vmem:[%s1] sm:$0xf]
      %v329 = vld [vmem:[%s1 + $0x4] sm:$0xf]
      %v330 = vld [vmem:[%s2] sm:$0x1]
      %v332 = vperm.slane %v330, 0
      %v336 = vunpack.c.l.b16 %v328
      %v337 = vunpack.c.l.b16 %v329
      %v338 = vpack.c.b16 %v337, %v336
      %vm340 = vcmask 130048
      %v342 = vsel %vm340, %v312, 0
      %v345 = vsel %vm340, %v313, 0
      %v348 = vsel %vm340, %v314, 0
      %v351 = vsel %vm340, %v315, 0
      %v354 = vsel %vm340, %v316, 0
      %v357 = vsel %vm340, %v317, 0
      %v360 = vsel %vm340, %v318, 0
      %v363 = vsel %vm340, %v319, 0
      %v366 = vsel %vm340, %v320, 0
      %v369 = vsel %vm340, %v321, 0
      %v372 = vsel %vm340, %v322, 0
      %v375 = vsel %vm340, %v323, 0
      %v378 = vsel %vm340, %v324, 0
      %v381 = vsel %vm340, %v325, 0
      %v384 = vsel %vm340, %v326, 0
      %v387 = vsel %vm340, %v327, 0
      %389 = vmatpush.bf16.msra.mxu0 0
      %390 = vmatpush.bf16.msra.mxu0 0
      %391 = vmatpush.bf16.msra.mxu0 0
      %392 = vmatpush.bf16.msra.mxu0 0
      %393 = vmatpush.bf16.msra.mxu0 0
      %394 = vmatpush.bf16.msra.mxu0 0
      %395 = vmatpush.bf16.msra.mxu0 0
      %396 = vmatpush.bf16.msra.mxu0 %v338
      %397 = vmatmul.bf16.gmra.mxu0 %v342
      %v398 = vpop.f32.mrf.mxu0
      %v399 = vadd.f32 %v332, %v398
      %v400 = vpop.f32.mrf.mxu0
      %v401 = vadd.f32 %v332, %v400
      %402 = vmatmul.bf16.gmra.mxu0 %v345
      %v403 = vpop.f32.mrf.mxu0
      %v404 = vadd.f32 %v332, %v403
      %v405 = vpop.f32.mrf.mxu0
      %v406 = vadd.f32 %v332, %v405
      %407 = vmatmul.bf16.gmra.mxu0 %v348
      %v408 = vpop.f32.mrf.mxu0
      %v409 = vadd.f32 %v332, %v408
      %v410 = vpop.f32.mrf.mxu0
      %v411 = vadd.f32 %v332, %v410
      %412 = vmatmul.bf16.gmra.mxu0 %v351
      %v413 = vpop.f32.mrf.mxu0
      %v414 = vadd.f32 %v332, %v413
      %v415 = vpop.f32.mrf.mxu0
      %v416 = vadd.f32 %v332, %v415
      %417 = vmatmul.bf16.gmra.mxu0 %v354
      %v418 = vpop.f32.mrf.mxu0
      %v419 = vadd.f32 %v332, %v418
      %v420 = vpop.f32.mrf.mxu0
      %v421 = vadd.f32 %v332, %v420
      %422 = vmatmul.bf16.gmra.mxu0 %v357
      %v423 = vpop.f32.mrf.mxu0
      %v424 = vadd.f32 %v332, %v423
      %v425 = vpop.f32.mrf.mxu0
      %v426 = vadd.f32 %v332, %v425
      %427 = vmatmul.bf16.gmra.mxu0 %v360
      %v428 = vpop.f32.mrf.mxu0
      %v429 = vadd.f32 %v332, %v428
      %v430 = vpop.f32.mrf.mxu0
      %v431 = vadd.f32 %v332, %v430
      %432 = vmatmul.bf16.gmra.mxu0 %v363
      %v433 = vpop.f32.mrf.mxu0
      %v434 = vadd.f32 %v332, %v433
      %v435 = vpop.f32.mrf.mxu0
      %v436 = vadd.f32 %v332, %v435
      %437 = vmatmul.bf16.gmra.mxu0 %v366
      %v438 = vpop.f32.mrf.mxu0
      %v439 = vadd.f32 %v332, %v438
      %v440 = vpop.f32.mrf.mxu0
      %v441 = vadd.f32 %v332, %v440
      %442 = vmatmul.bf16.gmra.mxu0 %v369
      %v443 = vpop.f32.mrf.mxu0
      %v444 = vadd.f32 %v332, %v443
      %v445 = vpop.f32.mrf.mxu0
      %v446 = vadd.f32 %v332, %v445
      %447 = vmatmul.bf16.gmra.mxu0 %v372
      %v448 = vpop.f32.mrf.mxu0
      %v449 = vadd.f32 %v332, %v448
      %v450 = vpop.f32.mrf.mxu0
      %v451 = vadd.f32 %v332, %v450
      %452 = vmatmul.bf16.gmra.mxu0 %v375
      %v453 = vpop.f32.mrf.mxu0
      %v454 = vadd.f32 %v332, %v453
      %v455 = vpop.f32.mrf.mxu0
      %v456 = vadd.f32 %v332, %v455
      %457 = vmatmul.bf16.gmra.mxu0 %v378
      %v458 = vpop.f32.mrf.mxu0
      %v459 = vadd.f32 %v332, %v458
      %v460 = vpop.f32.mrf.mxu0
      %v461 = vadd.f32 %v332, %v460
      %462 = vmatmul.bf16.gmra.mxu0 %v381
      %v463 = vpop.f32.mrf.mxu0
      %v464 = vadd.f32 %v332, %v463
      %v465 = vpop.f32.mrf.mxu0
      %v466 = vadd.f32 %v332, %v465
      %467 = vmatmul.bf16.gmra.mxu0 %v384
      %v468 = vpop.f32.mrf.mxu0
      %v469 = vadd.f32 %v332, %v468
      %v470 = vpop.f32.mrf.mxu0
      %v471 = vadd.f32 %v332, %v470
      %472 = vmatmul.bf16.gmra.mxu0 %v387
      %v473 = vpop.f32.mrf.mxu0
      %v474 = vadd.f32 %v332, %v473
      %v475 = vpop.f32.mrf.mxu0
      %v476 = vadd.f32 %v332, %v475
      %477 = vdwg.mxu0
      %v478 = vmax.f32 %v399, 0.0
      %v479 = vmax.f32 %v401, 0.0
      %v480 = vmax.f32 %v404, 0.0
      %v481 = vmax.f32 %v406, 0.0
      %v482 = vmax.f32 %v409, 0.0
      %v483 = vmax.f32 %v411, 0.0
      %v484 = vmax.f32 %v414, 0.0
      %v485 = vmax.f32 %v416, 0.0
      %v486 = vmax.f32 %v419, 0.0
      %v487 = vmax.f32 %v421, 0.0
      %v488 = vmax.f32 %v424, 0.0
      %v489 = vmax.f32 %v426, 0.0
      %v490 = vmax.f32 %v429, 0.0
      %v491 = vmax.f32 %v431, 0.0
      %v492 = vmax.f32 %v434, 0.0
      %v493 = vmax.f32 %v436, 0.0
      %v494 = vmax.f32 %v439, 0.0
      %v495 = vmax.f32 %v441, 0.0
      %v496 = vmax.f32 %v444, 0.0
      %v497 = vmax.f32 %v446, 0.0
      %v498 = vmax.f32 %v449, 0.0
      %v499 = vmax.f32 %v451, 0.0
      %v500 = vmax.f32 %v454, 0.0
      %v501 = vmax.f32 %v456, 0.0
      %v502 = vmax.f32 %v459, 0.0
      %v503 = vmax.f32 %v461, 0.0
      %v504 = vmax.f32 %v464, 0.0
      %v505 = vmax.f32 %v466, 0.0
      %v506 = vmax.f32 %v469, 0.0
      %v507 = vmax.f32 %v471, 0.0
      %v508 = vmax.f32 %v474, 0.0
      %v509 = vmax.f32 %v476, 0.0
      %vm510 = vcmask 31744
      %511 = vst.msk [vmem:[#allocation2] sm:$0xff] %vm510, 0.0
      %512 = vst.msk [vmem:[#allocation2 + $0x8] sm:$0xff] %vm510, 0.0
      %vm513 = vcmask 25600
      %514 = vst.msk [vmem:[#allocation2 + $0x10] sm:$0x3] %vm513, 0.0
      %s515 = scalar_lea.vmem [#allocation2], 408
      %516 = vst.msk [vmem:[%s515] sm:$0xff] %vm510, 0.0
      %517 = vst.msk [vmem:[%s515 + $0x8] sm:$0xff] %vm510, 0.0
      %518 = vst.msk [vmem:[%s515 + $0x10] sm:$0x3] %vm513, 0.0
      %s519 = scalar_lea.vmem [#allocation2], 24
      %520 = vst.msk [vmem:[%s519 + $0x1] sm:$0xff] %vm510, %v478
      %521 = vst.msk [vmem:[%s519 + $0x9] sm:$0xff] %vm510, %v479
      %522 = vst.msk [vmem:[%s519 + $0x19] sm:$0xff] %vm510, %v480
      %523 = vst.msk [vmem:[%s519 + $0x21] sm:$0xff] %vm510, %v481
      %524 = vst.msk [vmem:[%s519 + $0x31] sm:$0xff] %vm510, %v482
      %525 = vst.msk [vmem:[%s519 + $0x39] sm:$0xff] %vm510, %v483
      %526 = vst.msk [vmem:[%s519 + $0x49] sm:$0xff] %vm510, %v484
      %527 = vst.msk [vmem:[%s519 + $0x51] sm:$0xff] %vm510, %v485
      %528 = vst.msk [vmem:[%s519 + $0x61] sm:$0xff] %vm510, %v486
      %529 = vst.msk [vmem:[%s519 + $0x69] sm:$0xff] %vm510, %v487
      %530 = vst.msk [vmem:[%s519 + $0x79] sm:$0xff] %vm510, %v488
      %531 = vst.msk [vmem:[%s519 + $0x81] sm:$0xff] %vm510, %v489
      %532 = vst.msk [vmem:[%s519 + $0x91] sm:$0xff] %vm510, %v490
      %533 = vst.msk [vmem:[%s519 + $0x99] sm:$0xff] %vm510, %v491
      %534 = vst.msk [vmem:[%s519 + $0xa9] sm:$0xff] %vm510, %v492
      %535 = vst.msk [vmem:[%s519 + $0xb1] sm:$0xff] %vm510, %v493
      %536 = vst.msk [vmem:[%s519 + $0xc1] sm:$0xff] %vm510, %v494
      %537 = vst.msk [vmem:[%s519 + $0xc9] sm:$0xff] %vm510, %v495
      %538 = vst.msk [vmem:[%s519 + $0xd9] sm:$0xff] %vm510, %v496
      %539 = vst.msk [vmem:[%s519 + $0xe1] sm:$0xff] %vm510, %v497
      %540 = vst.msk [vmem:[%s519 + $0xf1] sm:$0xff] %vm510, %v498
      %541 = vst.msk [vmem:[%s519 + $0xf9] sm:$0xff] %vm510, %v499
      %542 = vst.msk [vmem:[%s519 + $0x109] sm:$0xff] %vm510, %v500
      %543 = vst.msk [vmem:[%s519 + $0x111] sm:$0xff] %vm510, %v501
      %544 = vst.msk [vmem:[%s519 + $0x121] sm:$0xff] %vm510, %v502
      %545 = vst.msk [vmem:[%s519 + $0x129] sm:$0xff] %vm510, %v503
      %546 = vst.msk [vmem:[%s519 + $0x139] sm:$0xff] %vm510, %v504
      %547 = vst.msk [vmem:[%s519 + $0x141] sm:$0xff] %vm510, %v505
      %548 = vst.msk [vmem:[%s519 + $0x151] sm:$0xff] %vm510, %v506
      %549 = vst.msk [vmem:[%s519 + $0x159] sm:$0xff] %vm510, %v507
      %550 = vst.msk [vmem:[%s519 + $0x169] sm:$0xff] %vm510, %v508
      %551 = vst.msk [vmem:[%s519 + $0x171] sm:$0xff] %vm510, %v509
      %v552 = vld [vmem:[#allocation2] sm:$0xff]
      %v553 = vld [vmem:[#allocation2 + $0x8] sm:$0xff]
      %v554 = vld [vmem:[#allocation2 + $0x18] sm:$0xff]
      %v555 = vld [vmem:[#allocation2 + $0x20] sm:$0xff]
      %v556 = vld [vmem:[#allocation2 + $0x30] sm:$0xff]
      %v557 = vld [vmem:[#allocation2 + $0x38] sm:$0xff]
      %v558 = vld [vmem:[#allocation2 + $0x48] sm:$0xff]
      %v559 = vld [vmem:[#allocation2 + $0x50] sm:$0xff]
      %v560 = vld [vmem:[#allocation2 + $0x60] sm:$0xff]
      %v561 = vld [vmem:[#allocation2 + $0x68] sm:$0xff]
      %v562 = vld [vmem:[#allocation2 + $0x78] sm:$0xff]
      %v563 = vld [vmem:[#allocation2 + $0x80] sm:$0xff]
      %v564 = vld [vmem:[#allocation2 + $0x90] sm:$0xff]
      %v565 = vld [vmem:[#allocation2 + $0x98] sm:$0xff]
      %v566 = vld [vmem:[#allocation2 + $0xa8] sm:$0xff]
      %v567 = vld [vmem:[#allocation2 + $0xb0] sm:$0xff]
      %v568 = vld [vmem:[#allocation2 + $0xc0] sm:$0xff]
      %v569 = vld [vmem:[#allocation2 + $0xc8] sm:$0xff]
      %v570 = vld [vmem:[#allocation2 + $0xd8] sm:$0xff]
      %v571 = vld [vmem:[#allocation2 + $0xe0] sm:$0xff]
      %v572 = vld [vmem:[#allocation2 + $0xf0] sm:$0xff]
      %v573 = vld [vmem:[#allocation2 + $0xf8] sm:$0xff]
      %v574 = vld [vmem:[#allocation2 + $0x108] sm:$0xff]
      %v575 = vld [vmem:[#allocation2 + $0x110] sm:$0xff]
      %v576 = vld [vmem:[#allocation2 + $0x120] sm:$0xff]
      %v577 = vld [vmem:[#allocation2 + $0x128] sm:$0xff]
      %v578 = vld [vmem:[#allocation2 + $0x138] sm:$0xff]
      %v579 = vld [vmem:[#allocation2 + $0x140] sm:$0xff]
      %v580 = vld [vmem:[#allocation2 + $0x150] sm:$0xff]
      %v581 = vld [vmem:[#allocation2 + $0x158] sm:$0xff]
      %v582 = vld [vmem:[#allocation2 + $0x168] sm:$0xff]
      %v583 = vld [vmem:[#allocation2 + $0x170] sm:$0xff]
      %v584 = vld [vmem:[#allocation2 + $0x180] sm:$0xff]
      %v585 = vld [vmem:[#allocation2 + $0x188] sm:$0xff]
      %v586 = vld [vmem:[#allocation2 + $0x198] sm:$0xff]
      %v587 = vld [vmem:[#allocation2 + $0x1a0] sm:$0xff]
      %v588 = vld [vmem:[#allocation2 + $0x1] sm:$0xff]
      %v589 = vld [vmem:[#allocation2 + $0x9] sm:$0xff]
      %v590 = vld [vmem:[#allocation2 + $0x19] sm:$0xff]
      %v591 = vld [vmem:[#allocation2 + $0x21] sm:$0xff]
      %v592 = vld [vmem:[#allocation2 + $0x31] sm:$0xff]
      %v593 = vld [vmem:[#allocation2 + $0x39] sm:$0xff]
      %v594 = vld [vmem:[#allocation2 + $0x49] sm:$0xff]
      %v595 = vld [vmem:[#allocation2 + $0x51] sm:$0xff]
      %v596 = vld [vmem:[#allocation2 + $0x61] sm:$0xff]
      %v597 = vld [vmem:[#allocation2 + $0x69] sm:$0xff]
      %v598 = vld [vmem:[#allocation2 + $0x79] sm:$0xff]
      %v599 = vld [vmem:[#allocation2 + $0x81] sm:$0xff]
      %v600 = vld [vmem:[#allocation2 + $0x91] sm:$0xff]
      %v601 = vld [vmem:[#allocation2 + $0x99] sm:$0xff]
      %v602 = vld [vmem:[#allocation2 + $0xa9] sm:$0xff]
      %v603 = vld [vmem:[#allocation2 + $0xb1] sm:$0xff]
      %v604 = vld [vmem:[#allocation2 + $0xc1] sm:$0xff]
      %v605 = vld [vmem:[#allocation2 + $0xc9] sm:$0xff]
      %v606 = vld [vmem:[#allocation2 + $0xd9] sm:$0xff]
      %v607 = vld [vmem:[#allocation2 + $0xe1] sm:$0xff]
      %v608 = vld [vmem:[#allocation2 + $0xf1] sm:$0xff]
      %v609 = vld [vmem:[#allocation2 + $0xf9] sm:$0xff]
      %v610 = vld [vmem:[#allocation2 + $0x109] sm:$0xff]
      %v611 = vld [vmem:[#allocation2 + $0x111] sm:$0xff]
      %v612 = vld [vmem:[#allocation2 + $0x121] sm:$0xff]
      %v613 = vld [vmem:[#allocation2 + $0x129] sm:$0xff]
      %v614 = vld [vmem:[#allocation2 + $0x139] sm:$0xff]
      %v615 = vld [vmem:[#allocation2 + $0x141] sm:$0xff]
      %v616 = vld [vmem:[#allocation2 + $0x151] sm:$0xff]
      %v617 = vld [vmem:[#allocation2 + $0x159] sm:$0xff]
      %v618 = vld [vmem:[#allocation2 + $0x169] sm:$0xff]
      %v619 = vld [vmem:[#allocation2 + $0x171] sm:$0xff]
      %v620 = vld [vmem:[#allocation2 + $0x181] sm:$0xff]
      %v621 = vld [vmem:[#allocation2 + $0x189] sm:$0xff]
      %v622 = vld [vmem:[#allocation2 + $0x199] sm:$0xff]
      %v623 = vld [vmem:[#allocation2 + $0x1a1] sm:$0xff]
      %v624 = vld [vmem:[#allocation2 + $0x2] sm:$0xff]
      %v625 = vld [vmem:[#allocation2 + $0xa] sm:$0xff]
      %v626 = vld [vmem:[#allocation2 + $0x1a] sm:$0xff]
      %v627 = vld [vmem:[#allocation2 + $0x22] sm:$0xff]
      %v628 = vld [vmem:[#allocation2 + $0x32] sm:$0xff]
      %v629 = vld [vmem:[#allocation2 + $0x3a] sm:$0xff]
      %v630 = vld [vmem:[#allocation2 + $0x4a] sm:$0xff]
      %v631 = vld [vmem:[#allocation2 + $0x52] sm:$0xff]
      %v632 = vld [vmem:[#allocation2 + $0x62] sm:$0xff]
      %v633 = vld [vmem:[#allocation2 + $0x6a] sm:$0xff]
      %v634 = vld [vmem:[#allocation2 + $0x7a] sm:$0xff]
      %v635 = vld [vmem:[#allocation2 + $0x82] sm:$0xff]
      %v636 = vld [vmem:[#allocation2 + $0x92] sm:$0xff]
      %v637 = vld [vmem:[#allocation2 + $0x9a] sm:$0xff]
      %v638 = vld [vmem:[#allocation2 + $0xaa] sm:$0xff]
      %v639 = vld [vmem:[#allocation2 + $0xb2] sm:$0xff]
      %v640 = vld [vmem:[#allocation2 + $0xc2] sm:$0xff]
      %v641 = vld [vmem:[#allocation2 + $0xca] sm:$0xff]
      %v642 = vld [vmem:[#allocation2 + $0xda] sm:$0xff]
      %v643 = vld [vmem:[#allocation2 + $0xe2] sm:$0xff]
      %v644 = vld [vmem:[#allocation2 + $0xf2] sm:$0xff]
      %v645 = vld [vmem:[#allocation2 + $0xfa] sm:$0xff]
      %v646 = vld [vmem:[#allocation2 + $0x10a] sm:$0xff]
      %v647 = vld [vmem:[#allocation2 + $0x112] sm:$0xff]
      %v648 = vld [vmem:[#allocation2 + $0x122] sm:$0xff]
      %v649 = vld [vmem:[#allocation2 + $0x12a] sm:$0xff]
      %v650 = vld [vmem:[#allocation2 + $0x13a] sm:$0xff]
      %v651 = vld [vmem:[#allocation2 + $0x142] sm:$0xff]
      %v652 = vld [vmem:[#allocation2 + $0x152] sm:$0xff]
      %v653 = vld [vmem:[#allocation2 + $0x15a] sm:$0xff]
      %v654 = vld [vmem:[#allocation2 + $0x16a] sm:$0xff]
      %v655 = vld [vmem:[#allocation2 + $0x172] sm:$0xff]
      %v656 = vld [vmem:[#allocation2 + $0x182] sm:$0xff]
      %v657 = vld [vmem:[#allocation2 + $0x18a] sm:$0xff]
      %v658 = vld [vmem:[#allocation2 + $0x19a] sm:$0xff]
      %v659 = vld [vmem:[#allocation2 + $0x1a2] sm:$0xff]
      %v660 = vlaneseq
      %v661 = vshrl.u32 %v660, 7
      %v662 = vadd.s32 %v661, 8
      %vm663 = vcmp.ge.s32.totalorder %v661, 1
      %vm664 = vcmp.ge.s32.totalorder %v662, 1
      %v665 = vsel %vm663, %v552, 0.0
      %v666 = vsel %vm664, %v553, 0.0
      %v667 = vsel %vm663, %v554, 0.0
      %v668 = vsel %vm664, %v555, 0.0
      %v669 = vsel %vm663, %v556, 0.0
      %v670 = vsel %vm664, %v557, 0.0
      %v671 = vsel %vm663, %v558, 0.0
      %v672 = vsel %vm664, %v559, 0.0
      %v673 = vsel %vm663, %v560, 0.0
      %v674 = vsel %vm664, %v561, 0.0
      %v675 = vsel %vm663, %v562, 0.0
      %v676 = vsel %vm664, %v563, 0.0
      %v677 = vsel %vm663, %v564, 0.0
      %v678 = vsel %vm664, %v565, 0.0
      %v679 = vsel %vm663, %v566, 0.0
      %v680 = vsel %vm664, %v567, 0.0
      %v681 = vsel %vm663, %v568, 0.0
      %v682 = vsel %vm664, %v569, 0.0
      %v683 = vsel %vm663, %v570, 0.0
      %v684 = vsel %vm664, %v571, 0.0
      %v685 = vsel %vm663, %v572, 0.0
      %v686 = vsel %vm664, %v573, 0.0
      %v687 = vsel %vm663, %v574, 0.0
      %v688 = vsel %vm664, %v575, 0.0
      %v689 = vsel %vm663, %v576, 0.0
      %v690 = vsel %vm664, %v577, 0.0
      %v691 = vsel %vm663, %v578, 0.0
      %v692 = vsel %vm664, %v579, 0.0
      %v693 = vsel %vm663, %v580, 0.0
      %v694 = vsel %vm664, %v581, 0.0
      %v695 = vsel %vm663, %v582, 0.0
      %v696 = vsel %vm664, %v583, 0.0
      %v697 = vsel %vm663, %v584, 0.0
      %v698 = vsel %vm664, %v585, 0.0
      %v699 = vsel %vm663, %v586, 0.0
      %v700 = vsel %vm664, %v587, 0.0
      %vm701 = vcmp.le.s32.totalorder %v661, 14
      %vm702 = vcmp.le.s32.totalorder %v662, 14
      %v703 = vsel %vm701, %v624, 0.0
      %v704 = vsel %vm702, %v625, 0.0
      %v705 = vsel %vm701, %v626, 0.0
      %v706 = vsel %vm702, %v627, 0.0
      %v707 = vsel %vm701, %v628, 0.0
      %v708 = vsel %vm702, %v629, 0.0
      %v709 = vsel %vm701, %v630, 0.0
      %v710 = vsel %vm702, %v631, 0.0
      %v711 = vsel %vm701, %v632, 0.0
      %v712 = vsel %vm702, %v633, 0.0
      %v713 = vsel %vm701, %v634, 0.0
      %v714 = vsel %vm702, %v635, 0.0
      %v715 = vsel %vm701, %v636, 0.0
      %v716 = vsel %vm702, %v637, 0.0
      %v717 = vsel %vm701, %v638, 0.0
      %v718 = vsel %vm702, %v639, 0.0
      %v719 = vsel %vm701, %v640, 0.0
      %v720 = vsel %vm702, %v641, 0.0
      %v721 = vsel %vm701, %v642, 0.0
      %v722 = vsel %vm702, %v643, 0.0
      %v723 = vsel %vm701, %v644, 0.0
      %v724 = vsel %vm702, %v645, 0.0
      %v725 = vsel %vm701, %v646, 0.0
      %v726 = vsel %vm702, %v647, 0.0
      %v727 = vsel %vm701, %v648, 0.0
      %v728 = vsel %vm702, %v649, 0.0
      %v729 = vsel %vm701, %v650, 0.0
      %v730 = vsel %vm702, %v651, 0.0
      %v731 = vsel %vm701, %v652, 0.0
      %v732 = vsel %vm702, %v653, 0.0
      %v733 = vsel %vm701, %v654, 0.0
      %v734 = vsel %vm702, %v655, 0.0
      %v735 = vsel %vm701, %v656, 0.0
      %v736 = vsel %vm702, %v657, 0.0
      %v737 = vsel %vm701, %v658, 0.0
      %v738 = vsel %vm702, %v659, 0.0
      %v739 = vpack.c.bf16 %v666, %v665
      %v740 = vpack.c.bf16 %v668, %v667
      %v741 = vpack.c.bf16 %v670, %v669
      %v742 = vpack.c.bf16 %v672, %v671
      %v743 = vpack.c.bf16 %v674, %v673
      %v744 = vpack.c.bf16 %v676, %v675
      %v745 = vpack.c.bf16 %v678, %v677
      %v746 = vpack.c.bf16 %v680, %v679
      %v747 = vpack.c.bf16 %v682, %v681
      %v748 = vpack.c.bf16 %v684, %v683
      %v749 = vpack.c.bf16 %v686, %v685
      %v750 = vpack.c.bf16 %v688, %v687
      %v751 = vpack.c.bf16 %v690, %v689
      %v752 = vpack.c.bf16 %v692, %v691
      %v753 = vpack.c.bf16 %v694, %v693
      %v754 = vpack.c.bf16 %v696, %v695
      %v755 = vld [vmem:[%s3] sm:$0x3]
      %v756 = vpack.c.bf16 %v589, %v588
      %v757 = vpack.c.bf16 %v591, %v590
      %v758 = vpack.c.bf16 %v593, %v592
      %v759 = vpack.c.bf16 %v595, %v594
      %v760 = vpack.c.bf16 %v597, %v596
      %v761 = vpack.c.bf16 %v599, %v598
      %v762 = vpack.c.bf16 %v601, %v600
      %v763 = vpack.c.bf16 %v603, %v602
      %v764 = vpack.c.bf16 %v605, %v604
      %v765 = vpack.c.bf16 %v607, %v606
      %v766 = vpack.c.bf16 %v609, %v608
      %v767 = vpack.c.bf16 %v611, %v610
      %v768 = vpack.c.bf16 %v613, %v612
      %v769 = vpack.c.bf16 %v615, %v614
      %v770 = vpack.c.bf16 %v617, %v616
      %v771 = vpack.c.bf16 %v619, %v618
      %s772 = scalar_lea.vmem %s3, 2
      %v773 = vld [vmem:[%s772] sm:$0x3]
      %v775 = vsel %vm510, %v756, 0
      %v778 = vsel %vm510, %v757, 0
      %v781 = vsel %vm510, %v758, 0
      %v784 = vsel %vm510, %v759, 0
      %v787 = vsel %vm510, %v760, 0
      %v790 = vsel %vm510, %v761, 0
      %v793 = vsel %vm510, %v762, 0
      %v796 = vsel %vm510, %v763, 0
      %v799 = vsel %vm510, %v764, 0
      %v802 = vsel %vm510, %v765, 0
      %v805 = vsel %vm510, %v766, 0
      %v808 = vsel %vm510, %v767, 0
      %v811 = vsel %vm510, %v768, 0
      %v814 = vsel %vm510, %v769, 0
      %v817 = vsel %vm510, %v770, 0
      %v820 = vsel %vm510, %v771, 0
      %vm822 = vcmask 1041408
      %v824 = vsel %vm822, %v773, 0
      %826 = vmatpush.bf16.msra.mxu0 0
      %827 = vmatpush.bf16.msra.mxu0 0
      %828 = vmatpush.bf16.msra.mxu0 0
      %829 = vmatpush.bf16.msra.mxu0 0
      %830 = vmatpush.bf16.msra.mxu0 0
      %831 = vmatpush.bf16.msra.mxu0 0
      %832 = vmatpush.bf16.msra.mxu0 0
      %833 = vmatpush.bf16.msra.mxu0 %v824
      %834 = vmatmul.bf16.gmra.mxu0 %v775
      %v835 = vpop.f32.mrf.mxu0
      %v836 = vadd.f32 0.0, %v835
      %v837 = vpop.f32.mrf.mxu0
      %v838 = vadd.f32 0.0, %v837
      %839 = vmatmul.bf16.gmra.mxu0 %v778
      %v840 = vpop.f32.mrf.mxu0
      %v841 = vadd.f32 0.0, %v840
      %v842 = vpop.f32.mrf.mxu0
      %v843 = vadd.f32 0.0, %v842
      %844 = vmatmul.bf16.gmra.mxu0 %v781
      %v845 = vpop.f32.mrf.mxu0
      %v846 = vadd.f32 0.0, %v845
      %v847 = vpop.f32.mrf.mxu0
      %v848 = vadd.f32 0.0, %v847
      %849 = vmatmul.bf16.gmra.mxu0 %v784
      %v850 = vpop.f32.mrf.mxu0
      %v851 = vadd.f32 0.0, %v850
      %v852 = vpop.f32.mrf.mxu0
      %v853 = vadd.f32 0.0, %v852
      %854 = vmatmul.bf16.gmra.mxu0 %v787
      %v855 = vpop.f32.mrf.mxu0
      %v856 = vadd.f32 0.0, %v855
      %v857 = vpop.f32.mrf.mxu0
      %v858 = vadd.f32 0.0, %v857
      %859 = vmatmul.bf16.gmra.mxu0 %v790
      %v860 = vpop.f32.mrf.mxu0
      %v861 = vadd.f32 0.0, %v860
      %v862 = vpop.f32.mrf.mxu0
      %v863 = vadd.f32 0.0, %v862
      %864 = vmatmul.bf16.gmra.mxu0 %v793
      %v865 = vpop.f32.mrf.mxu0
      %v866 = vadd.f32 0.0, %v865
      %v867 = vpop.f32.mrf.mxu0
      %v868 = vadd.f32 0.0, %v867
      %869 = vmatmul.bf16.gmra.mxu0 %v796
      %v870 = vpop.f32.mrf.mxu0
      %v871 = vadd.f32 0.0, %v870
      %v872 = vpop.f32.mrf.mxu0
      %v873 = vadd.f32 0.0, %v872
      %874 = vmatmul.bf16.gmra.mxu0 %v799
      %v875 = vpop.f32.mrf.mxu0
      %v876 = vadd.f32 0.0, %v875
      %v877 = vpop.f32.mrf.mxu0
      %v878 = vadd.f32 0.0, %v877
      %879 = vmatmul.bf16.gmra.mxu0 %v802
      %v880 = vpop.f32.mrf.mxu0
      %v881 = vadd.f32 0.0, %v880
      %v882 = vpop.f32.mrf.mxu0
      %v883 = vadd.f32 0.0, %v882
      %884 = vmatmul.bf16.gmra.mxu0 %v805
      %v885 = vpop.f32.mrf.mxu0
      %v886 = vadd.f32 0.0, %v885
      %v887 = vpop.f32.mrf.mxu0
      %v888 = vadd.f32 0.0, %v887
      %889 = vmatmul.bf16.gmra.mxu0 %v808
      %v890 = vpop.f32.mrf.mxu0
      %v891 = vadd.f32 0.0, %v890
      %v892 = vpop.f32.mrf.mxu0
      %v893 = vadd.f32 0.0, %v892
      %894 = vmatmul.bf16.gmra.mxu0 %v811
      %v895 = vpop.f32.mrf.mxu0
      %v896 = vadd.f32 0.0, %v895
      %v897 = vpop.f32.mrf.mxu0
      %v898 = vadd.f32 0.0, %v897
      %899 = vmatmul.bf16.gmra.mxu0 %v814
      %v900 = vpop.f32.mrf.mxu0
      %v901 = vadd.f32 0.0, %v900
      %v902 = vpop.f32.mrf.mxu0
      %v903 = vadd.f32 0.0, %v902
      %904 = vmatmul.bf16.gmra.mxu0 %v817
      %v905 = vpop.f32.mrf.mxu0
      %v906 = vadd.f32 0.0, %v905
      %v907 = vpop.f32.mrf.mxu0
      %v908 = vadd.f32 0.0, %v907
      %909 = vmatmul.bf16.gmra.mxu0 %v820
      %v910 = vpop.f32.mrf.mxu0
      %v911 = vadd.f32 0.0, %v910
      %v912 = vpop.f32.mrf.mxu0
      %v913 = vadd.f32 0.0, %v912
      %914 = vdwg.mxu0
      %v916 = vsel %vm510, %v739, 0
      %v919 = vsel %vm510, %v740, 0
      %v922 = vsel %vm510, %v741, 0
      %v925 = vsel %vm510, %v742, 0
      %v928 = vsel %vm510, %v743, 0
      %v931 = vsel %vm510, %v744, 0
      %v934 = vsel %vm510, %v745, 0
      %v937 = vsel %vm510, %v746, 0
      %v940 = vsel %vm510, %v747, 0
      %v943 = vsel %vm510, %v748, 0
      %v946 = vsel %vm510, %v749, 0
      %v949 = vsel %vm510, %v750, 0
      %v952 = vsel %vm510, %v751, 0
      %v955 = vsel %vm510, %v752, 0
      %v958 = vsel %vm510, %v753, 0
      %v961 = vsel %vm510, %v754, 0
      %v964 = vsel %vm822, %v755, 0
      %966 = vmatpush.bf16.msra.mxu0 0
      %967 = vmatpush.bf16.msra.mxu0 0
      %968 = vmatpush.bf16.msra.mxu0 0
      %969 = vmatpush.bf16.msra.mxu0 0
      %970 = vmatpush.bf16.msra.mxu0 0
      %971 = vmatpush.bf16.msra.mxu0 0
      %972 = vmatpush.bf16.msra.mxu0 0
      %973 = vmatpush.bf16.msra.mxu0 %v964
      %974 = vmatmul.bf16.gmra.mxu0 %v916
      %v975 = vpop.f32.mrf.mxu0
      %v976 = vadd.f32 %v836, %v975
      %v977 = vpop.f32.mrf.mxu0
      %v978 = vadd.f32 %v838, %v977
      %979 = vmatmul.bf16.gmra.mxu0 %v919
      %v980 = vpop.f32.mrf.mxu0
      %v981 = vadd.f32 %v841, %v980
      %v982 = vpop.f32.mrf.mxu0
      %v983 = vadd.f32 %v843, %v982
      %984 = vmatmul.bf16.gmra.mxu0 %v922
      %v985 = vpop.f32.mrf.mxu0
      %v986 = vadd.f32 %v846, %v985
      %v987 = vpop.f32.mrf.mxu0
      %v988 = vadd.f32 %v848, %v987
      %989 = vmatmul.bf16.gmra.mxu0 %v925
      %v990 = vpop.f32.mrf.mxu0
      %v991 = vadd.f32 %v851, %v990
      %v992 = vpop.f32.mrf.mxu0
      %v993 = vadd.f32 %v853, %v992
      %994 = vmatmul.bf16.gmra.mxu0 %v928
      %v995 = vpop.f32.mrf.mxu0
      %v996 = vadd.f32 %v856, %v995
      %v997 = vpop.f32.mrf.mxu0
      %v998 = vadd.f32 %v858, %v997
      %999 = vmatmul.bf16.gmra.mxu0 %v931
      %v1000 = vpop.f32.mrf.mxu0
      %v1001 = vadd.f32 %v861, %v1000
      %v1002 = vpop.f32.mrf.mxu0
      %v1003 = vadd.f32 %v863, %v1002
      %1004 = vmatmul.bf16.gmra.mxu0 %v934
      %v1005 = vpop.f32.mrf.mxu0
      %v1006 = vadd.f32 %v866, %v1005
      %v1007 = vpop.f32.mrf.mxu0
      %v1008 = vadd.f32 %v868, %v1007
      %1009 = vmatmul.bf16.gmra.mxu0 %v937
      %v1010 = vpop.f32.mrf.mxu0
      %v1011 = vadd.f32 %v871, %v1010
      %v1012 = vpop.f32.mrf.mxu0
      %v1013 = vadd.f32 %v873, %v1012
      %1014 = vmatmul.bf16.gmra.mxu0 %v940
      %v1015 = vpop.f32.mrf.mxu0
      %v1016 = vadd.f32 %v876, %v1015
      %v1017 = vpop.f32.mrf.mxu0
      %v1018 = vadd.f32 %v878, %v1017
      %1019 = vmatmul.bf16.gmra.mxu0 %v943
      %v1020 = vpop.f32.mrf.mxu0
      %v1021 = vadd.f32 %v881, %v1020
      %v1022 = vpop.f32.mrf.mxu0
      %v1023 = vadd.f32 %v883, %v1022
      %1024 = vmatmul.bf16.gmra.mxu0 %v946
      %v1025 = vpop.f32.mrf.mxu0
      %v1026 = vadd.f32 %v886, %v1025
      %v1027 = vpop.f32.mrf.mxu0
      %v1028 = vadd.f32 %v888, %v1027
      %1029 = vmatmul.bf16.gmra.mxu0 %v949
      %v1030 = vpop.f32.mrf.mxu0
      %v1031 = vadd.f32 %v891, %v1030
      %v1032 = vpop.f32.mrf.mxu0
      %v1033 = vadd.f32 %v893, %v1032
      %1034 = vmatmul.bf16.gmra.mxu0 %v952
      %v1035 = vpop.f32.mrf.mxu0
      %v1036 = vadd.f32 %v896, %v1035
      %v1037 = vpop.f32.mrf.mxu0
      %v1038 = vadd.f32 %v898, %v1037
      %1039 = vmatmul.bf16.gmra.mxu0 %v955
      %v1040 = vpop.f32.mrf.mxu0
      %v1041 = vadd.f32 %v901, %v1040
      %v1042 = vpop.f32.mrf.mxu0
      %v1043 = vadd.f32 %v903, %v1042
      %1044 = vmatmul.bf16.gmra.mxu0 %v958
      %v1045 = vpop.f32.mrf.mxu0
      %v1046 = vadd.f32 %v906, %v1045
      %v1047 = vpop.f32.mrf.mxu0
      %v1048 = vadd.f32 %v908, %v1047
      %1049 = vmatmul.bf16.gmra.mxu0 %v961
      %v1050 = vpop.f32.mrf.mxu0
      %v1051 = vadd.f32 %v911, %v1050
      %v1052 = vpop.f32.mrf.mxu0
      %v1053 = vadd.f32 %v913, %v1052
      %1054 = vdwg.mxu0
      %v1055 = vpack.c.bf16 %v704, %v703
      %v1056 = vpack.c.bf16 %v706, %v705
      %v1057 = vpack.c.bf16 %v708, %v707
      %v1058 = vpack.c.bf16 %v710, %v709
      %v1059 = vpack.c.bf16 %v712, %v711
      %v1060 = vpack.c.bf16 %v714, %v713
      %v1061 = vpack.c.bf16 %v716, %v715
      %v1062 = vpack.c.bf16 %v718, %v717
      %v1063 = vpack.c.bf16 %v720, %v719
      %v1064 = vpack.c.bf16 %v722, %v721
      %v1065 = vpack.c.bf16 %v724, %v723
      %v1066 = vpack.c.bf16 %v726, %v725
      %v1067 = vpack.c.bf16 %v728, %v727
      %v1068 = vpack.c.bf16 %v730, %v729
      %v1069 = vpack.c.bf16 %v732, %v731
      %v1070 = vpack.c.bf16 %v734, %v733
      %s1071 = scalar_lea.vmem %s3, 4
      %v1072 = vld [vmem:[%s1071] sm:$0x3]
      %v1074 = vsel %vm510, %v1055, 0
      %v1077 = vsel %vm510, %v1056, 0
      %v1080 = vsel %vm510, %v1057, 0
      %v1083 = vsel %vm510, %v1058, 0
      %v1086 = vsel %vm510, %v1059, 0
      %v1089 = vsel %vm510, %v1060, 0
      %v1092 = vsel %vm510, %v1061, 0
      %v1095 = vsel %vm510, %v1062, 0
      %v1098 = vsel %vm510, %v1063, 0
      %v1101 = vsel %vm510, %v1064, 0
      %v1104 = vsel %vm510, %v1065, 0
      %v1107 = vsel %vm510, %v1066, 0
      %v1110 = vsel %vm510, %v1067, 0
      %v1113 = vsel %vm510, %v1068, 0
      %v1116 = vsel %vm510, %v1069, 0
      %v1119 = vsel %vm510, %v1070, 0
      %v1122 = vsel %vm822, %v1072, 0
      %1124 = vmatpush.bf16.msra.mxu0 0
      %1125 = vmatpush.bf16.msra.mxu0 0
      %1126 = vmatpush.bf16.msra.mxu0 0
      %1127 = vmatpush.bf16.msra.mxu0 0
      %1128 = vmatpush.bf16.msra.mxu0 0
      %1129 = vmatpush.bf16.msra.mxu0 0
      %1130 = vmatpush.bf16.msra.mxu0 0
      %1131 = vmatpush.bf16.msra.mxu0 %v1122
      %1132 = vmatmul.bf16.gmra.mxu0 %v1074
      %v1133 = vpop.f32.mrf.mxu0
      %v1134 = vadd.f32 0.0, %v1133
      %v1135 = vpop.f32.mrf.mxu0
      %v1136 = vadd.f32 0.0, %v1135
      %1137 = vmatmul.bf16.gmra.mxu0 %v1077
      %v1138 = vpop.f32.mrf.mxu0
      %v1139 = vadd.f32 0.0, %v1138
      %v1140 = vpop.f32.mrf.mxu0
      %v1141 = vadd.f32 0.0, %v1140
      %1142 = vmatmul.bf16.gmra.mxu0 %v1080
      %v1143 = vpop.f32.mrf.mxu0
      %v1144 = vadd.f32 0.0, %v1143
      %v1145 = vpop.f32.mrf.mxu0
      %v1146 = vadd.f32 0.0, %v1145
      %1147 = vmatmul.bf16.gmra.mxu0 %v1083
      %v1148 = vpop.f32.mrf.mxu0
      %v1149 = vadd.f32 0.0, %v1148
      %v1150 = vpop.f32.mrf.mxu0
      %v1151 = vadd.f32 0.0, %v1150
      %1152 = vmatmul.bf16.gmra.mxu0 %v1086
      %v1153 = vpop.f32.mrf.mxu0
      %v1154 = vadd.f32 0.0, %v1153
      %v1155 = vpop.f32.mrf.mxu0
      %v1156 = vadd.f32 0.0, %v1155
      %1157 = vmatmul.bf16.gmra.mxu0 %v1089
      %v1158 = vpop.f32.mrf.mxu0
      %v1159 = vadd.f32 0.0, %v1158
      %v1160 = vpop.f32.mrf.mxu0
      %v1161 = vadd.f32 0.0, %v1160
      %1162 = vmatmul.bf16.gmra.mxu0 %v1092
      %v1163 = vpop.f32.mrf.mxu0
      %v1164 = vadd.f32 0.0, %v1163
      %v1165 = vpop.f32.mrf.mxu0
      %v1166 = vadd.f32 0.0, %v1165
      %1167 = vmatmul.bf16.gmra.mxu0 %v1095
      %v1168 = vpop.f32.mrf.mxu0
      %v1169 = vadd.f32 0.0, %v1168
      %v1170 = vpop.f32.mrf.mxu0
      %v1171 = vadd.f32 0.0, %v1170
      %1172 = vmatmul.bf16.gmra.mxu0 %v1098
      %v1173 = vpop.f32.mrf.mxu0
      %v1174 = vadd.f32 0.0, %v1173
      %v1175 = vpop.f32.mrf.mxu0
      %v1176 = vadd.f32 0.0, %v1175
      %1177 = vmatmul.bf16.gmra.mxu0 %v1101
      %v1178 = vpop.f32.mrf.mxu0
      %v1179 = vadd.f32 0.0, %v1178
      %v1180 = vpop.f32.mrf.mxu0
      %v1181 = vadd.f32 0.0, %v1180
      %1182 = vmatmul.bf16.gmra.mxu0 %v1104
      %v1183 = vpop.f32.mrf.mxu0
      %v1184 = vadd.f32 0.0, %v1183
      %v1185 = vpop.f32.mrf.mxu0
      %v1186 = vadd.f32 0.0, %v1185
      %1187 = vmatmul.bf16.gmra.mxu0 %v1107
      %v1188 = vpop.f32.mrf.mxu0
      %v1189 = vadd.f32 0.0, %v1188
      %v1190 = vpop.f32.mrf.mxu0
      %v1191 = vadd.f32 0.0, %v1190
      %1192 = vmatmul.bf16.gmra.mxu0 %v1110
      %v1193 = vpop.f32.mrf.mxu0
      %v1194 = vadd.f32 0.0, %v1193
      %v1195 = vpop.f32.mrf.mxu0
      %v1196 = vadd.f32 0.0, %v1195
      %1197 = vmatmul.bf16.gmra.mxu0 %v1113
      %v1198 = vpop.f32.mrf.mxu0
      %v1199 = vadd.f32 0.0, %v1198
      %v1200 = vpop.f32.mrf.mxu0
      %v1201 = vadd.f32 0.0, %v1200
      %1202 = vmatmul.bf16.gmra.mxu0 %v1116
      %v1203 = vpop.f32.mrf.mxu0
      %v1204 = vadd.f32 0.0, %v1203
      %v1205 = vpop.f32.mrf.mxu0
      %v1206 = vadd.f32 0.0, %v1205
      %1207 = vmatmul.bf16.gmra.mxu0 %v1119
      %v1208 = vpop.f32.mrf.mxu0
      %v1209 = vadd.f32 0.0, %v1208
      %v1210 = vpop.f32.mrf.mxu0
      %v1211 = vadd.f32 0.0, %v1210
      %1212 = vdwg.mxu0
      %v1213 = vadd.f32 %v976, %v1134
      %v1214 = vadd.f32 %v978, %v1136
      %v1215 = vadd.f32 %v981, %v1139
      %v1216 = vadd.f32 %v983, %v1141
      %v1217 = vadd.f32 %v986, %v1144
      %v1218 = vadd.f32 %v988, %v1146
      %v1219 = vadd.f32 %v991, %v1149
      %v1220 = vadd.f32 %v993, %v1151
      %v1221 = vadd.f32 %v996, %v1154
      %v1222 = vadd.f32 %v998, %v1156
      %v1223 = vadd.f32 %v1001, %v1159
      %v1224 = vadd.f32 %v1003, %v1161
      %v1225 = vadd.f32 %v1006, %v1164
      %v1226 = vadd.f32 %v1008, %v1166
      %v1227 = vadd.f32 %v1011, %v1169
      %v1228 = vadd.f32 %v1013, %v1171
      %v1229 = vadd.f32 %v1016, %v1174
      %v1230 = vadd.f32 %v1018, %v1176
      %v1231 = vadd.f32 %v1021, %v1179
      %v1232 = vadd.f32 %v1023, %v1181
      %v1233 = vadd.f32 %v1026, %v1184
      %v1234 = vadd.f32 %v1028, %v1186
      %v1235 = vadd.f32 %v1031, %v1189
      %v1236 = vadd.f32 %v1033, %v1191
      %v1237 = vadd.f32 %v1036, %v1194
      %v1238 = vadd.f32 %v1038, %v1196
      %v1239 = vadd.f32 %v1041, %v1199
      %v1240 = vadd.f32 %v1043, %v1201
      %v1241 = vadd.f32 %v1046, %v1204
      %v1242 = vadd.f32 %v1048, %v1206
      %v1243 = vadd.f32 %v1051, %v1209
      %v1244 = vadd.f32 %v1053, %v1211
      %v1245 = vpack.c.bf16 %v698, %v697
      %s1246 = scalar_lea.vmem %s3, 6
      %v1247 = vld [vmem:[%s1246] sm:$0x3]
      %v1249 = vsel %vm510, %v1245, 0
      %v1252 = vsel %vm822, %v1247, 0
      %1254 = vmatpush.bf16.msra.mxu0 0
      %1255 = vmatpush.bf16.msra.mxu0 0
      %1256 = vmatpush.bf16.msra.mxu0 0
      %1257 = vmatpush.bf16.msra.mxu0 0
      %1258 = vmatpush.bf16.msra.mxu0 0
      %1259 = vmatpush.bf16.msra.mxu0 0
      %1260 = vmatpush.bf16.msra.mxu0 0
      %1261 = vmatpush.bf16.msra.mxu0 %v1252
      %1262 = vmatmul.bf16.gmra.mxu0 %v919
      %v1263 = vpop.f32.mrf.mxu0
      %v1264 = vadd.f32 0.0, %v1263
      %v1265 = vpop.f32.mrf.mxu0
      %v1266 = vadd.f32 0.0, %v1265
      %1267 = vmatmul.bf16.gmra.mxu0 %v922
      %v1268 = vpop.f32.mrf.mxu0
      %v1269 = vadd.f32 0.0, %v1268
      %v1270 = vpop.f32.mrf.mxu0
      %v1271 = vadd.f32 0.0, %v1270
      %1272 = vmatmul.bf16.gmra.mxu0 %v925
      %v1273 = vpop.f32.mrf.mxu0
      %v1274 = vadd.f32 0.0, %v1273
      %v1275 = vpop.f32.mrf.mxu0
      %v1276 = vadd.f32 0.0, %v1275
      %1277 = vmatmul.bf16.gmra.mxu0 %v928
      %v1278 = vpop.f32.mrf.mxu0
      %v1279 = vadd.f32 0.0, %v1278
      %v1280 = vpop.f32.mrf.mxu0
      %v1281 = vadd.f32 0.0, %v1280
      %1282 = vmatmul.bf16.gmra.mxu0 %v931
      %v1283 = vpop.f32.mrf.mxu0
      %v1284 = vadd.f32 0.0, %v1283
      %v1285 = vpop.f32.mrf.mxu0
      %v1286 = vadd.f32 0.0, %v1285
      %1287 = vmatmul.bf16.gmra.mxu0 %v934
      %v1288 = vpop.f32.mrf.mxu0
      %v1289 = vadd.f32 0.0, %v1288
      %v1290 = vpop.f32.mrf.mxu0
      %v1291 = vadd.f32 0.0, %v1290
      %1292 = vmatmul.bf16.gmra.mxu0 %v937
      %v1293 = vpop.f32.mrf.mxu0
      %v1294 = vadd.f32 0.0, %v1293
      %v1295 = vpop.f32.mrf.mxu0
      %v1296 = vadd.f32 0.0, %v1295
      %1297 = vmatmul.bf16.gmra.mxu0 %v940
      %v1298 = vpop.f32.mrf.mxu0
      %v1299 = vadd.f32 0.0, %v1298
      %v1300 = vpop.f32.mrf.mxu0
      %v1301 = vadd.f32 0.0, %v1300
      %1302 = vmatmul.bf16.gmra.mxu0 %v943
      %v1303 = vpop.f32.mrf.mxu0
      %v1304 = vadd.f32 0.0, %v1303
      %v1305 = vpop.f32.mrf.mxu0
      %v1306 = vadd.f32 0.0, %v1305
      %1307 = vmatmul.bf16.gmra.mxu0 %v946
      %v1308 = vpop.f32.mrf.mxu0
      %v1309 = vadd.f32 0.0, %v1308
      %v1310 = vpop.f32.mrf.mxu0
      %v1311 = vadd.f32 0.0, %v1310
      %1312 = vmatmul.bf16.gmra.mxu0 %v949
      %v1313 = vpop.f32.mrf.mxu0
      %v1314 = vadd.f32 0.0, %v1313
      %v1315 = vpop.f32.mrf.mxu0
      %v1316 = vadd.f32 0.0, %v1315
      %1317 = vmatmul.bf16.gmra.mxu0 %v952
      %v1318 = vpop.f32.mrf.mxu0
      %v1319 = vadd.f32 0.0, %v1318
      %v1320 = vpop.f32.mrf.mxu0
      %v1321 = vadd.f32 0.0, %v1320
      %1322 = vmatmul.bf16.gmra.mxu0 %v955
      %v1323 = vpop.f32.mrf.mxu0
      %v1324 = vadd.f32 0.0, %v1323
      %v1325 = vpop.f32.mrf.mxu0
      %v1326 = vadd.f32 0.0, %v1325
      %1327 = vmatmul.bf16.gmra.mxu0 %v958
      %v1328 = vpop.f32.mrf.mxu0
      %v1329 = vadd.f32 0.0, %v1328
      %v1330 = vpop.f32.mrf.mxu0
      %v1331 = vadd.f32 0.0, %v1330
      %1332 = vmatmul.bf16.gmra.mxu0 %v961
      %v1333 = vpop.f32.mrf.mxu0
      %v1334 = vadd.f32 0.0, %v1333
      %v1335 = vpop.f32.mrf.mxu0
      %v1336 = vadd.f32 0.0, %v1335
      %1337 = vmatmul.bf16.gmra.mxu0 %v1249
      %v1338 = vpop.f32.mrf.mxu0
      %v1339 = vadd.f32 0.0, %v1338
      %v1340 = vpop.f32.mrf.mxu0
      %v1341 = vadd.f32 0.0, %v1340
      %1342 = vdwg.mxu0
      %v1343 = vadd.f32 %v1213, %v1264
      %v1344 = vadd.f32 %v1214, %v1266
      %v1345 = vadd.f32 %v1215, %v1269
      %v1346 = vadd.f32 %v1216, %v1271
      %v1347 = vadd.f32 %v1217, %v1274
      %v1348 = vadd.f32 %v1218, %v1276
      %v1349 = vadd.f32 %v1219, %v1279
      %v1350 = vadd.f32 %v1220, %v1281
      %v1351 = vadd.f32 %v1221, %v1284
      %v1352 = vadd.f32 %v1222, %v1286
      %v1353 = vadd.f32 %v1223, %v1289
      %v1354 = vadd.f32 %v1224, %v1291
      %v1355 = vadd.f32 %v1225, %v1294
      %v1356 = vadd.f32 %v1226, %v1296
      %v1357 = vadd.f32 %v1227, %v1299
      %v1358 = vadd.f32 %v1228, %v1301
      %v1359 = vadd.f32 %v1229, %v1304
      %v1360 = vadd.f32 %v1230, %v1306
      %v1361 = vadd.f32 %v1231, %v1309
      %v1362 = vadd.f32 %v1232, %v1311
      %v1363 = vadd.f32 %v1233, %v1314
      %v1364 = vadd.f32 %v1234, %v1316
      %v1365 = vadd.f32 %v1235, %v1319
      %v1366 = vadd.f32 %v1236, %v1321
      %v1367 = vadd.f32 %v1237, %v1324
      %v1368 = vadd.f32 %v1238, %v1326
      %v1369 = vadd.f32 %v1239, %v1329
      %v1370 = vadd.f32 %v1240, %v1331
      %v1371 = vadd.f32 %v1241, %v1334
      %v1372 = vadd.f32 %v1242, %v1336
      %v1373 = vadd.f32 %v1243, %v1339
      %v1374 = vadd.f32 %v1244, %v1341
      %v1375 = vpack.c.bf16 %v621, %v620
      %s1376 = scalar_lea.vmem %s3, 8
      %v1377 = vld [vmem:[%s1376] sm:$0x3]
      %v1379 = vsel %vm510, %v1375, 0
      %v1382 = vsel %vm822, %v1377, 0
      %1384 = vmatpush.bf16.msra.mxu0 0
      %1385 = vmatpush.bf16.msra.mxu0 0
      %1386 = vmatpush.bf16.msra.mxu0 0
      %1387 = vmatpush.bf16.msra.mxu0 0
      %1388 = vmatpush.bf16.msra.mxu0 0
      %1389 = vmatpush.bf16.msra.mxu0 0
      %1390 = vmatpush.bf16.msra.mxu0 0
      %1391 = vmatpush.bf16.msra.mxu0 %v1382
      %1392 = vmatmul.bf16.gmra.mxu0 %v778
      %v1393 = vpop.f32.mrf.mxu0
      %v1394 = vadd.f32 0.0, %v1393
      %v1395 = vpop.f32.mrf.mxu0
      %v1396 = vadd.f32 0.0, %v1395
      %1397 = vmatmul.bf16.gmra.mxu0 %v781
      %v1398 = vpop.f32.mrf.mxu0
      %v1399 = vadd.f32 0.0, %v1398
      %v1400 = vpop.f32.mrf.mxu0
      %v1401 = vadd.f32 0.0, %v1400
      %1402 = vmatmul.bf16.gmra.mxu0 %v784
      %v1403 = vpop.f32.mrf.mxu0
      %v1404 = vadd.f32 0.0, %v1403
      %v1405 = vpop.f32.mrf.mxu0
      %v1406 = vadd.f32 0.0, %v1405
      %1407 = vmatmul.bf16.gmra.mxu0 %v787
      %v1408 = vpop.f32.mrf.mxu0
      %v1409 = vadd.f32 0.0, %v1408
      %v1410 = vpop.f32.mrf.mxu0
      %v1411 = vadd.f32 0.0, %v1410
      %1412 = vmatmul.bf16.gmra.mxu0 %v790
      %v1413 = vpop.f32.mrf.mxu0
      %v1414 = vadd.f32 0.0, %v1413
      %v1415 = vpop.f32.mrf.mxu0
      %v1416 = vadd.f32 0.0, %v1415
      %1417 = vmatmul.bf16.gmra.mxu0 %v793
      %v1418 = vpop.f32.mrf.mxu0
      %v1419 = vadd.f32 0.0, %v1418
      %v1420 = vpop.f32.mrf.mxu0
      %v1421 = vadd.f32 0.0, %v1420
      %1422 = vmatmul.bf16.gmra.mxu0 %v796
      %v1423 = vpop.f32.mrf.mxu0
      %v1424 = vadd.f32 0.0, %v1423
      %v1425 = vpop.f32.mrf.mxu0
      %v1426 = vadd.f32 0.0, %v1425
      %1427 = vmatmul.bf16.gmra.mxu0 %v799
      %v1428 = vpop.f32.mrf.mxu0
      %v1429 = vadd.f32 0.0, %v1428
      %v1430 = vpop.f32.mrf.mxu0
      %v1431 = vadd.f32 0.0, %v1430
      %1432 = vmatmul.bf16.gmra.mxu0 %v802
      %v1433 = vpop.f32.mrf.mxu0
      %v1434 = vadd.f32 0.0, %v1433
      %v1435 = vpop.f32.mrf.mxu0
      %v1436 = vadd.f32 0.0, %v1435
      %1437 = vmatmul.bf16.gmra.mxu0 %v805
      %v1438 = vpop.f32.mrf.mxu0
      %v1439 = vadd.f32 0.0, %v1438
      %v1440 = vpop.f32.mrf.mxu0
      %v1441 = vadd.f32 0.0, %v1440
      %1442 = vmatmul.bf16.gmra.mxu0 %v808
      %v1443 = vpop.f32.mrf.mxu0
      %v1444 = vadd.f32 0.0, %v1443
      %v1445 = vpop.f32.mrf.mxu0
      %v1446 = vadd.f32 0.0, %v1445
      %1447 = vmatmul.bf16.gmra.mxu0 %v811
      %v1448 = vpop.f32.mrf.mxu0
      %v1449 = vadd.f32 0.0, %v1448
      %v1450 = vpop.f32.mrf.mxu0
      %v1451 = vadd.f32 0.0, %v1450
      %1452 = vmatmul.bf16.gmra.mxu0 %v814
      %v1453 = vpop.f32.mrf.mxu0
      %v1454 = vadd.f32 0.0, %v1453
      %v1455 = vpop.f32.mrf.mxu0
      %v1456 = vadd.f32 0.0, %v1455
      %1457 = vmatmul.bf16.gmra.mxu0 %v817
      %v1458 = vpop.f32.mrf.mxu0
      %v1459 = vadd.f32 0.0, %v1458
      %v1460 = vpop.f32.mrf.mxu0
      %v1461 = vadd.f32 0.0, %v1460
      %1462 = vmatmul.bf16.gmra.mxu0 %v820
      %v1463 = vpop.f32.mrf.mxu0
      %v1464 = vadd.f32 0.0, %v1463
      %v1465 = vpop.f32.mrf.mxu0
      %v1466 = vadd.f32 0.0, %v1465
      %1467 = vmatmul.bf16.gmra.mxu0 %v1379
      %v1468 = vpop.f32.mrf.mxu0
      %v1469 = vadd.f32 0.0, %v1468
      %v1470 = vpop.f32.mrf.mxu0
      %v1471 = vadd.f32 0.0, %v1470
      %1472 = vdwg.mxu0
      %v1473 = vadd.f32 %v1343, %v1394
      %v1474 = vadd.f32 %v1344, %v1396
      %v1475 = vadd.f32 %v1345, %v1399
      %v1476 = vadd.f32 %v1346, %v1401
      %v1477 = vadd.f32 %v1347, %v1404
      %v1478 = vadd.f32 %v1348, %v1406
      %v1479 = vadd.f32 %v1349, %v1409
      %v1480 = vadd.f32 %v1350, %v1411
      %v1481 = vadd.f32 %v1351, %v1414
      %v1482 = vadd.f32 %v1352, %v1416
      %v1483 = vadd.f32 %v1353, %v1419
      %v1484 = vadd.f32 %v1354, %v1421
      %v1485 = vadd.f32 %v1355, %v1424
      %v1486 = vadd.f32 %v1356, %v1426
      %v1487 = vadd.f32 %v1357, %v1429
      %v1488 = vadd.f32 %v1358, %v1431
      %v1489 = vadd.f32 %v1359, %v1434
      %v1490 = vadd.f32 %v1360, %v1436
      %v1491 = vadd.f32 %v1361, %v1439
      %v1492 = vadd.f32 %v1362, %v1441
      %v1493 = vadd.f32 %v1363, %v1444
      %v1494 = vadd.f32 %v1364, %v1446
      %v1495 = vadd.f32 %v1365, %v1449
      %v1496 = vadd.f32 %v1366, %v1451
      %v1497 = vadd.f32 %v1367, %v1454
      %v1498 = vadd.f32 %v1368, %v1456
      %v1499 = vadd.f32 %v1369, %v1459
      %v1500 = vadd.f32 %v1370, %v1461
      %v1501 = vadd.f32 %v1371, %v1464
      %v1502 = vadd.f32 %v1372, %v1466
      %v1503 = vadd.f32 %v1373, %v1469
      %v1504 = vadd.f32 %v1374, %v1471
      %v1505 = vpack.c.bf16 %v736, %v735
      %s1506 = scalar_lea.vmem %s3, 10
      %v1507 = vld [vmem:[%s1506] sm:$0x3]
      %v1509 = vsel %vm510, %v1505, 0
      %v1512 = vsel %vm822, %v1507, 0
      %1514 = vmatpush.bf16.msra.mxu0 0
      %1515 = vmatpush.bf16.msra.mxu0 0
      %1516 = vmatpush.bf16.msra.mxu0 0
      %1517 = vmatpush.bf16.msra.mxu0 0
      %1518 = vmatpush.bf16.msra.mxu0 0
      %1519 = vmatpush.bf16.msra.mxu0 0
      %1520 = vmatpush.bf16.msra.mxu0 0
      %1521 = vmatpush.bf16.msra.mxu0 %v1512
      %1522 = vmatmul.bf16.gmra.mxu0 %v1077
      %v1523 = vpop.f32.mrf.mxu0
      %v1524 = vadd.f32 0.0, %v1523
      %v1525 = vpop.f32.mrf.mxu0
      %v1526 = vadd.f32 0.0, %v1525
      %1527 = vmatmul.bf16.gmra.mxu0 %v1080
      %v1528 = vpop.f32.mrf.mxu0
      %v1529 = vadd.f32 0.0, %v1528
      %v1530 = vpop.f32.mrf.mxu0
      %v1531 = vadd.f32 0.0, %v1530
      %1532 = vmatmul.bf16.gmra.mxu0 %v1083
      %v1533 = vpop.f32.mrf.mxu0
      %v1534 = vadd.f32 0.0, %v1533
      %v1535 = vpop.f32.mrf.mxu0
      %v1536 = vadd.f32 0.0, %v1535
      %1537 = vmatmul.bf16.gmra.mxu0 %v1086
      %v1538 = vpop.f32.mrf.mxu0
      %v1539 = vadd.f32 0.0, %v1538
      %v1540 = vpop.f32.mrf.mxu0
      %v1541 = vadd.f32 0.0, %v1540
      %1542 = vmatmul.bf16.gmra.mxu0 %v1089
      %v1543 = vpop.f32.mrf.mxu0
      %v1544 = vadd.f32 0.0, %v1543
      %v1545 = vpop.f32.mrf.mxu0
      %v1546 = vadd.f32 0.0, %v1545
      %1547 = vmatmul.bf16.gmra.mxu0 %v1092
      %v1548 = vpop.f32.mrf.mxu0
      %v1549 = vadd.f32 0.0, %v1548
      %v1550 = vpop.f32.mrf.mxu0
      %v1551 = vadd.f32 0.0, %v1550
      %1552 = vmatmul.bf16.gmra.mxu0 %v1095
      %v1553 = vpop.f32.mrf.mxu0
      %v1554 = vadd.f32 0.0, %v1553
      %v1555 = vpop.f32.mrf.mxu0
      %v1556 = vadd.f32 0.0, %v1555
      %1557 = vmatmul.bf16.gmra.mxu0 %v1098
      %v1558 = vpop.f32.mrf.mxu0
      %v1559 = vadd.f32 0.0, %v1558
      %v1560 = vpop.f32.mrf.mxu0
      %v1561 = vadd.f32 0.0, %v1560
      %1562 = vmatmul.bf16.gmra.mxu0 %v1101
      %v1563 = vpop.f32.mrf.mxu0
      %v1564 = vadd.f32 0.0, %v1563
      %v1565 = vpop.f32.mrf.mxu0
      %v1566 = vadd.f32 0.0, %v1565
      %1567 = vmatmul.bf16.gmra.mxu0 %v1104
      %v1568 = vpop.f32.mrf.mxu0
      %v1569 = vadd.f32 0.0, %v1568
      %v1570 = vpop.f32.mrf.mxu0
      %v1571 = vadd.f32 0.0, %v1570
      %1572 = vmatmul.bf16.gmra.mxu0 %v1107
      %v1573 = vpop.f32.mrf.mxu0
      %v1574 = vadd.f32 0.0, %v1573
      %v1575 = vpop.f32.mrf.mxu0
      %v1576 = vadd.f32 0.0, %v1575
      %1577 = vmatmul.bf16.gmra.mxu0 %v1110
      %v1578 = vpop.f32.mrf.mxu0
      %v1579 = vadd.f32 0.0, %v1578
      %v1580 = vpop.f32.mrf.mxu0
      %v1581 = vadd.f32 0.0, %v1580
      %1582 = vmatmul.bf16.gmra.mxu0 %v1113
      %v1583 = vpop.f32.mrf.mxu0
      %v1584 = vadd.f32 0.0, %v1583
      %v1585 = vpop.f32.mrf.mxu0
      %v1586 = vadd.f32 0.0, %v1585
      %1587 = vmatmul.bf16.gmra.mxu0 %v1116
      %v1588 = vpop.f32.mrf.mxu0
      %v1589 = vadd.f32 0.0, %v1588
      %v1590 = vpop.f32.mrf.mxu0
      %v1591 = vadd.f32 0.0, %v1590
      %1592 = vmatmul.bf16.gmra.mxu0 %v1119
      %v1593 = vpop.f32.mrf.mxu0
      %v1594 = vadd.f32 0.0, %v1593
      %v1595 = vpop.f32.mrf.mxu0
      %v1596 = vadd.f32 0.0, %v1595
      %1597 = vmatmul.bf16.gmra.mxu0 %v1509
      %v1598 = vpop.f32.mrf.mxu0
      %v1599 = vadd.f32 0.0, %v1598
      %v1600 = vpop.f32.mrf.mxu0
      %v1601 = vadd.f32 0.0, %v1600
      %1602 = vdwg.mxu0
      %v1603 = vadd.f32 %v1473, %v1524
      %v1604 = vadd.f32 %v1474, %v1526
      %v1605 = vadd.f32 %v1475, %v1529
      %v1606 = vadd.f32 %v1476, %v1531
      %v1607 = vadd.f32 %v1477, %v1534
      %v1608 = vadd.f32 %v1478, %v1536
      %v1609 = vadd.f32 %v1479, %v1539
      %v1610 = vadd.f32 %v1480, %v1541
      %v1611 = vadd.f32 %v1481, %v1544
      %v1612 = vadd.f32 %v1482, %v1546
      %v1613 = vadd.f32 %v1483, %v1549
      %v1614 = vadd.f32 %v1484, %v1551
      %v1615 = vadd.f32 %v1485, %v1554
      %v1616 = vadd.f32 %v1486, %v1556
      %v1617 = vadd.f32 %v1487, %v1559
      %v1618 = vadd.f32 %v1488, %v1561
      %v1619 = vadd.f32 %v1489, %v1564
      %v1620 = vadd.f32 %v1490, %v1566
      %v1621 = vadd.f32 %v1491, %v1569
      %v1622 = vadd.f32 %v1492, %v1571
      %v1623 = vadd.f32 %v1493, %v1574
      %v1624 = vadd.f32 %v1494, %v1576
      %v1625 = vadd.f32 %v1495, %v1579
      %v1626 = vadd.f32 %v1496, %v1581
      %v1627 = vadd.f32 %v1497, %v1584
      %v1628 = vadd.f32 %v1498, %v1586
      %v1629 = vadd.f32 %v1499, %v1589
      %v1630 = vadd.f32 %v1500, %v1591
      %v1631 = vadd.f32 %v1501, %v1594
      %v1632 = vadd.f32 %v1502, %v1596
      %v1633 = vadd.f32 %v1503, %v1599
      %v1634 = vadd.f32 %v1504, %v1601
      %v1635 = vpack.c.bf16 %v700, %v699
      %s1636 = scalar_lea.vmem %s3, 12
      %v1637 = vld [vmem:[%s1636] sm:$0x3]
      %v1639 = vsel %vm510, %v1635, 0
      %v1642 = vsel %vm822, %v1637, 0
      %1644 = vmatpush.bf16.msra.mxu0 0
      %1645 = vmatpush.bf16.msra.mxu0 0
      %1646 = vmatpush.bf16.msra.mxu0 0
      %1647 = vmatpush.bf16.msra.mxu0 0
      %1648 = vmatpush.bf16.msra.mxu0 0
      %1649 = vmatpush.bf16.msra.mxu0 0
      %1650 = vmatpush.bf16.msra.mxu0 0
      %1651 = vmatpush.bf16.msra.mxu0 %v1642
      %1652 = vmatmul.bf16.gmra.mxu0 %v922
      %v1653 = vpop.f32.mrf.mxu0
      %v1654 = vadd.f32 0.0, %v1653
      %v1655 = vpop.f32.mrf.mxu0
      %v1656 = vadd.f32 0.0, %v1655
      %1657 = vmatmul.bf16.gmra.mxu0 %v925
      %v1658 = vpop.f32.mrf.mxu0
      %v1659 = vadd.f32 0.0, %v1658
      %v1660 = vpop.f32.mrf.mxu0
      %v1661 = vadd.f32 0.0, %v1660
      %1662 = vmatmul.bf16.gmra.mxu0 %v928
      %v1663 = vpop.f32.mrf.mxu0
      %v1664 = vadd.f32 0.0, %v1663
      %v1665 = vpop.f32.mrf.mxu0
      %v1666 = vadd.f32 0.0, %v1665
      %1667 = vmatmul.bf16.gmra.mxu0 %v931
      %v1668 = vpop.f32.mrf.mxu0
      %v1669 = vadd.f32 0.0, %v1668
      %v1670 = vpop.f32.mrf.mxu0
      %v1671 = vadd.f32 0.0, %v1670
      %1672 = vmatmul.bf16.gmra.mxu0 %v934
      %v1673 = vpop.f32.mrf.mxu0
      %v1674 = vadd.f32 0.0, %v1673
      %v1675 = vpop.f32.mrf.mxu0
      %v1676 = vadd.f32 0.0, %v1675
      %1677 = vmatmul.bf16.gmra.mxu0 %v937
      %v1678 = vpop.f32.mrf.mxu0
      %v1679 = vadd.f32 0.0, %v1678
      %v1680 = vpop.f32.mrf.mxu0
      %v1681 = vadd.f32 0.0, %v1680
      %1682 = vmatmul.bf16.gmra.mxu0 %v940
      %v1683 = vpop.f32.mrf.mxu0
      %v1684 = vadd.f32 0.0, %v1683
      %v1685 = vpop.f32.mrf.mxu0
      %v1686 = vadd.f32 0.0, %v1685
      %1687 = vmatmul.bf16.gmra.mxu0 %v943
      %v1688 = vpop.f32.mrf.mxu0
      %v1689 = vadd.f32 0.0, %v1688
      %v1690 = vpop.f32.mrf.mxu0
      %v1691 = vadd.f32 0.0, %v1690
      %1692 = vmatmul.bf16.gmra.mxu0 %v946
      %v1693 = vpop.f32.mrf.mxu0
      %v1694 = vadd.f32 0.0, %v1693
      %v1695 = vpop.f32.mrf.mxu0
      %v1696 = vadd.f32 0.0, %v1695
      %1697 = vmatmul.bf16.gmra.mxu0 %v949
      %v1698 = vpop.f32.mrf.mxu0
      %v1699 = vadd.f32 0.0, %v1698
      %v1700 = vpop.f32.mrf.mxu0
      %v1701 = vadd.f32 0.0, %v1700
      %1702 = vmatmul.bf16.gmra.mxu0 %v952
      %v1703 = vpop.f32.mrf.mxu0
      %v1704 = vadd.f32 0.0, %v1703
      %v1705 = vpop.f32.mrf.mxu0
      %v1706 = vadd.f32 0.0, %v1705
      %1707 = vmatmul.bf16.gmra.mxu0 %v955
      %v1708 = vpop.f32.mrf.mxu0
      %v1709 = vadd.f32 0.0, %v1708
      %v1710 = vpop.f32.mrf.mxu0
      %v1711 = vadd.f32 0.0, %v1710
      %1712 = vmatmul.bf16.gmra.mxu0 %v958
      %v1713 = vpop.f32.mrf.mxu0
      %v1714 = vadd.f32 0.0, %v1713
      %v1715 = vpop.f32.mrf.mxu0
      %v1716 = vadd.f32 0.0, %v1715
      %1717 = vmatmul.bf16.gmra.mxu0 %v961
      %v1718 = vpop.f32.mrf.mxu0
      %v1719 = vadd.f32 0.0, %v1718
      %v1720 = vpop.f32.mrf.mxu0
      %v1721 = vadd.f32 0.0, %v1720
      %1722 = vmatmul.bf16.gmra.mxu0 %v1249
      %v1723 = vpop.f32.mrf.mxu0
      %v1724 = vadd.f32 0.0, %v1723
      %v1725 = vpop.f32.mrf.mxu0
      %v1726 = vadd.f32 0.0, %v1725
      %1727 = vmatmul.bf16.gmra.mxu0 %v1639
      %v1728 = vpop.f32.mrf.mxu0
      %v1729 = vadd.f32 0.0, %v1728
      %v1730 = vpop.f32.mrf.mxu0
      %v1731 = vadd.f32 0.0, %v1730
      %1732 = vdwg.mxu0
      %v1733 = vadd.f32 %v1603, %v1654
      %v1734 = vadd.f32 %v1604, %v1656
      %v1735 = vadd.f32 %v1605, %v1659
      %v1736 = vadd.f32 %v1606, %v1661
      %v1737 = vadd.f32 %v1607, %v1664
      %v1738 = vadd.f32 %v1608, %v1666
      %v1739 = vadd.f32 %v1609, %v1669
      %v1740 = vadd.f32 %v1610, %v1671
      %v1741 = vadd.f32 %v1611, %v1674
      %v1742 = vadd.f32 %v1612, %v1676
      %v1743 = vadd.f32 %v1613, %v1679
      %v1744 = vadd.f32 %v1614, %v1681
      %v1745 = vadd.f32 %v1615, %v1684
      %v1746 = vadd.f32 %v1616, %v1686
      %v1747 = vadd.f32 %v1617, %v1689
      %v1748 = vadd.f32 %v1618, %v1691
      %v1749 = vadd.f32 %v1619, %v1694
      %v1750 = vadd.f32 %v1620, %v1696
      %v1751 = vadd.f32 %v1621, %v1699
      %v1752 = vadd.f32 %v1622, %v1701
      %v1753 = vadd.f32 %v1623, %v1704
      %v1754 = vadd.f32 %v1624, %v1706
      %v1755 = vadd.f32 %v1625, %v1709
      %v1756 = vadd.f32 %v1626, %v1711
      %v1757 = vadd.f32 %v1627, %v1714
      %v1758 = vadd.f32 %v1628, %v1716
      %v1759 = vadd.f32 %v1629, %v1719
      %v1760 = vadd.f32 %v1630, %v1721
      %v1761 = vadd.f32 %v1631, %v1724
      %v1762 = vadd.f32 %v1632, %v1726
      %v1763 = vadd.f32 %v1633, %v1729
      %v1764 = vadd.f32 %v1634, %v1731
      %v1765 = vpack.c.bf16 %v623, %v622
      %s1766 = scalar_lea.vmem %s3, 14
      %v1767 = vld [vmem:[%s1766] sm:$0x3]
      %v1769 = vsel %vm510, %v1765, 0
      %v1772 = vsel %vm822, %v1767, 0
      %1774 = vmatpush.bf16.msra.mxu0 0
      %1775 = vmatpush.bf16.msra.mxu0 0
      %1776 = vmatpush.bf16.msra.mxu0 0
      %1777 = vmatpush.bf16.msra.mxu0 0
      %1778 = vmatpush.bf16.msra.mxu0 0
      %1779 = vmatpush.bf16.msra.mxu0 0
      %1780 = vmatpush.bf16.msra.mxu0 0
      %1781 = vmatpush.bf16.msra.mxu0 %v1772
      %1782 = vmatmul.bf16.gmra.mxu0 %v781
      %v1783 = vpop.f32.mrf.mxu0
      %v1784 = vadd.f32 0.0, %v1783
      %v1785 = vpop.f32.mrf.mxu0
      %v1786 = vadd.f32 0.0, %v1785
      %1787 = vmatmul.bf16.gmra.mxu0 %v784
      %v1788 = vpop.f32.mrf.mxu0
      %v1789 = vadd.f32 0.0, %v1788
      %v1790 = vpop.f32.mrf.mxu0
      %v1791 = vadd.f32 0.0, %v1790
      %1792 = vmatmul.bf16.gmra.mxu0 %v787
      %v1793 = vpop.f32.mrf.mxu0
      %v1794 = vadd.f32 0.0, %v1793
      %v1795 = vpop.f32.mrf.mxu0
      %v1796 = vadd.f32 0.0, %v1795
      %1797 = vmatmul.bf16.gmra.mxu0 %v790
      %v1798 = vpop.f32.mrf.mxu0
      %v1799 = vadd.f32 0.0, %v1798
      %v1800 = vpop.f32.mrf.mxu0
      %v1801 = vadd.f32 0.0, %v1800
      %1802 = vmatmul.bf16.gmra.mxu0 %v793
      %v1803 = vpop.f32.mrf.mxu0
      %v1804 = vadd.f32 0.0, %v1803
      %v1805 = vpop.f32.mrf.mxu0
      %v1806 = vadd.f32 0.0, %v1805
      %1807 = vmatmul.bf16.gmra.mxu0 %v796
      %v1808 = vpop.f32.mrf.mxu0
      %v1809 = vadd.f32 0.0, %v1808
      %v1810 = vpop.f32.mrf.mxu0
      %v1811 = vadd.f32 0.0, %v1810
      %1812 = vmatmul.bf16.gmra.mxu0 %v799
      %v1813 = vpop.f32.mrf.mxu0
      %v1814 = vadd.f32 0.0, %v1813
      %v1815 = vpop.f32.mrf.mxu0
      %v1816 = vadd.f32 0.0, %v1815
      %1817 = vmatmul.bf16.gmra.mxu0 %v802
      %v1818 = vpop.f32.mrf.mxu0
      %v1819 = vadd.f32 0.0, %v1818
      %v1820 = vpop.f32.mrf.mxu0
      %v1821 = vadd.f32 0.0, %v1820
      %1822 = vmatmul.bf16.gmra.mxu0 %v805
      %v1823 = vpop.f32.mrf.mxu0
      %v1824 = vadd.f32 0.0, %v1823
      %v1825 = vpop.f32.mrf.mxu0
      %v1826 = vadd.f32 0.0, %v1825
      %1827 = vmatmul.bf16.gmra.mxu0 %v808
      %v1828 = vpop.f32.mrf.mxu0
      %v1829 = vadd.f32 0.0, %v1828
      %v1830 = vpop.f32.mrf.mxu0
      %v1831 = vadd.f32 0.0, %v1830
      %1832 = vmatmul.bf16.gmra.mxu0 %v811
      %v1833 = vpop.f32.mrf.mxu0
      %v1834 = vadd.f32 0.0, %v1833
      %v1835 = vpop.f32.mrf.mxu0
      %v1836 = vadd.f32 0.0, %v1835
      %1837 = vmatmul.bf16.gmra.mxu0 %v814
      %v1838 = vpop.f32.mrf.mxu0
      %v1839 = vadd.f32 0.0, %v1838
      %v1840 = vpop.f32.mrf.mxu0
      %v1841 = vadd.f32 0.0, %v1840
      %1842 = vmatmul.bf16.gmra.mxu0 %v817
      %v1843 = vpop.f32.mrf.mxu0
      %v1844 = vadd.f32 0.0, %v1843
      %v1845 = vpop.f32.mrf.mxu0
      %v1846 = vadd.f32 0.0, %v1845
      %1847 = vmatmul.bf16.gmra.mxu0 %v820
      %v1848 = vpop.f32.mrf.mxu0
      %v1849 = vadd.f32 0.0, %v1848
      %v1850 = vpop.f32.mrf.mxu0
      %v1851 = vadd.f32 0.0, %v1850
      %1852 = vmatmul.bf16.gmra.mxu0 %v1379
      %v1853 = vpop.f32.mrf.mxu0
      %v1854 = vadd.f32 0.0, %v1853
      %v1855 = vpop.f32.mrf.mxu0
      %v1856 = vadd.f32 0.0, %v1855
      %1857 = vmatmul.bf16.gmra.mxu0 %v1769
      %v1858 = vpop.f32.mrf.mxu0
      %v1859 = vadd.f32 0.0, %v1858
      %v1860 = vpop.f32.mrf.mxu0
      %v1861 = vadd.f32 0.0, %v1860
      %1862 = vdwg.mxu0
      %v1863 = vadd.f32 %v1733, %v1784
      %v1864 = vadd.f32 %v1734, %v1786
      %v1865 = vadd.f32 %v1735, %v1789
      %v1866 = vadd.f32 %v1736, %v1791
      %v1867 = vadd.f32 %v1737, %v1794
      %v1868 = vadd.f32 %v1738, %v1796
      %v1869 = vadd.f32 %v1739, %v1799
      %v1870 = vadd.f32 %v1740, %v1801
      %v1871 = vadd.f32 %v1741, %v1804
      %v1872 = vadd.f32 %v1742, %v1806
      %v1873 = vadd.f32 %v1743, %v1809
      %v1874 = vadd.f32 %v1744, %v1811
      %v1875 = vadd.f32 %v1745, %v1814
      %v1876 = vadd.f32 %v1746, %v1816
      %v1877 = vadd.f32 %v1747, %v1819
      %v1878 = vadd.f32 %v1748, %v1821
      %v1879 = vadd.f32 %v1749, %v1824
      %v1880 = vadd.f32 %v1750, %v1826
      %v1881 = vadd.f32 %v1751, %v1829
      %v1882 = vadd.f32 %v1752, %v1831
      %v1883 = vadd.f32 %v1753, %v1834
      %v1884 = vadd.f32 %v1754, %v1836
      %v1885 = vadd.f32 %v1755, %v1839
      %v1886 = vadd.f32 %v1756, %v1841
      %v1887 = vadd.f32 %v1757, %v1844
      %v1888 = vadd.f32 %v1758, %v1846
      %v1889 = vadd.f32 %v1759, %v1849
      %v1890 = vadd.f32 %v1760, %v1851
      %v1891 = vadd.f32 %v1761, %v1854
      %v1892 = vadd.f32 %v1762, %v1856
      %v1893 = vadd.f32 %v1763, %v1859
      %v1894 = vadd.f32 %v1764, %v1861
      %v1895 = vpack.c.bf16 %v738, %v737
      %s1896 = scalar_lea.vmem %s3, 16
      %v1897 = vld [vmem:[%s1896] sm:$0x3]
      %v1899 = vsel %vm510, %v1895, 0
      %v1902 = vsel %vm822, %v1897, 0
      %1904 = vmatpush.bf16.msra.mxu0 0
      %1905 = vmatpush.bf16.msra.mxu0 0
      %1906 = vmatpush.bf16.msra.mxu0 0
      %1907 = vmatpush.bf16.msra.mxu0 0
      %1908 = vmatpush.bf16.msra.mxu0 0
      %1909 = vmatpush.bf16.msra.mxu0 0
      %1910 = vmatpush.bf16.msra.mxu0 0
      %1911 = vmatpush.bf16.msra.mxu0 %v1902
      %1912 = vmatmul.bf16.gmra.mxu0 %v1080
      %v1913 = vpop.f32.mrf.mxu0
      %v1914 = vadd.f32 0.0, %v1913
      %v1915 = vpop.f32.mrf.mxu0
      %v1916 = vadd.f32 0.0, %v1915
      %1917 = vmatmul.bf16.gmra.mxu0 %v1083
      %v1918 = vpop.f32.mrf.mxu0
      %v1919 = vadd.f32 0.0, %v1918
      %v1920 = vpop.f32.mrf.mxu0
      %v1921 = vadd.f32 0.0, %v1920
      %1922 = vmatmul.bf16.gmra.mxu0 %v1086
      %v1923 = vpop.f32.mrf.mxu0
      %v1924 = vadd.f32 0.0, %v1923
      %v1925 = vpop.f32.mrf.mxu0
      %v1926 = vadd.f32 0.0, %v1925
      %1927 = vmatmul.bf16.gmra.mxu0 %v1089
      %v1928 = vpop.f32.mrf.mxu0
      %v1929 = vadd.f32 0.0, %v1928
      %v1930 = vpop.f32.mrf.mxu0
      %v1931 = vadd.f32 0.0, %v1930
      %1932 = vmatmul.bf16.gmra.mxu0 %v1092
      %v1933 = vpop.f32.mrf.mxu0
      %v1934 = vadd.f32 0.0, %v1933
      %v1935 = vpop.f32.mrf.mxu0
      %v1936 = vadd.f32 0.0, %v1935
      %1937 = vmatmul.bf16.gmra.mxu0 %v1095
      %v1938 = vpop.f32.mrf.mxu0
      %v1939 = vadd.f32 0.0, %v1938
      %v1940 = vpop.f32.mrf.mxu0
      %v1941 = vadd.f32 0.0, %v1940
      %1942 = vmatmul.bf16.gmra.mxu0 %v1098
      %v1943 = vpop.f32.mrf.mxu0
      %v1944 = vadd.f32 0.0, %v1943
      %v1945 = vpop.f32.mrf.mxu0
      %v1946 = vadd.f32 0.0, %v1945
      %1947 = vmatmul.bf16.gmra.mxu0 %v1101
      %v1948 = vpop.f32.mrf.mxu0
      %v1949 = vadd.f32 0.0, %v1948
      %v1950 = vpop.f32.mrf.mxu0
      %v1951 = vadd.f32 0.0, %v1950
      %1952 = vmatmul.bf16.gmra.mxu0 %v1104
      %v1953 = vpop.f32.mrf.mxu0
      %v1954 = vadd.f32 0.0, %v1953
      %v1955 = vpop.f32.mrf.mxu0
      %v1956 = vadd.f32 0.0, %v1955
      %1957 = vmatmul.bf16.gmra.mxu0 %v1107
      %v1958 = vpop.f32.mrf.mxu0
      %v1959 = vadd.f32 0.0, %v1958
      %v1960 = vpop.f32.mrf.mxu0
      %v1961 = vadd.f32 0.0, %v1960
      %1962 = vmatmul.bf16.gmra.mxu0 %v1110
      %v1963 = vpop.f32.mrf.mxu0
      %v1964 = vadd.f32 0.0, %v1963
      %v1965 = vpop.f32.mrf.mxu0
      %v1966 = vadd.f32 0.0, %v1965
      %1967 = vmatmul.bf16.gmra.mxu0 %v1113
      %v1968 = vpop.f32.mrf.mxu0
      %v1969 = vadd.f32 0.0, %v1968
      %v1970 = vpop.f32.mrf.mxu0
      %v1971 = vadd.f32 0.0, %v1970
      %1972 = vmatmul.bf16.gmra.mxu0 %v1116
      %v1973 = vpop.f32.mrf.mxu0
      %v1974 = vadd.f32 0.0, %v1973
      %v1975 = vpop.f32.mrf.mxu0
      %v1976 = vadd.f32 0.0, %v1975
      %1977 = vmatmul.bf16.gmra.mxu0 %v1119
      %v1978 = vpop.f32.mrf.mxu0
      %v1979 = vadd.f32 0.0, %v1978
      %v1980 = vpop.f32.mrf.mxu0
      %v1981 = vadd.f32 0.0, %v1980
      %1982 = vmatmul.bf16.gmra.mxu0 %v1509
      %v1983 = vpop.f32.mrf.mxu0
      %v1984 = vadd.f32 0.0, %v1983
      %v1985 = vpop.f32.mrf.mxu0
      %v1986 = vadd.f32 0.0, %v1985
      %1987 = vmatmul.bf16.gmra.mxu0 %v1899
      %v1988 = vpop.f32.mrf.mxu0
      %v1989 = vadd.f32 0.0, %v1988
      %v1990 = vpop.f32.mrf.mxu0
      %v1991 = vadd.f32 0.0, %v1990
      %1992 = vdwg.mxu0
      %v1993 = vadd.f32 %v1863, %v1914
      %v1994 = vadd.f32 %v1864, %v1916
      %v1995 = vadd.f32 %v1865, %v1919
      %v1996 = vadd.f32 %v1866, %v1921
      %v1997 = vadd.f32 %v1867, %v1924
      %v1998 = vadd.f32 %v1868, %v1926
      %v1999 = vadd.f32 %v1869, %v1929
      %v2000 = vadd.f32 %v1870, %v1931
      %v2001 = vadd.f32 %v1871, %v1934
      %v2002 = vadd.f32 %v1872, %v1936
      %v2003 = vadd.f32 %v1873, %v1939
      %v2004 = vadd.f32 %v1874, %v1941
      %v2005 = vadd.f32 %v1875, %v1944
      %v2006 = vadd.f32 %v1876, %v1946
      %v2007 = vadd.f32 %v1877, %v1949
      %v2008 = vadd.f32 %v1878, %v1951
      %v2009 = vadd.f32 %v1879, %v1954
      %v2010 = vadd.f32 %v1880, %v1956
      %v2011 = vadd.f32 %v1881, %v1959
      %v2012 = vadd.f32 %v1882, %v1961
      %v2013 = vadd.f32 %v1883, %v1964
      %v2014 = vadd.f32 %v1884, %v1966
      %v2015 = vadd.f32 %v1885, %v1969
      %v2016 = vadd.f32 %v1886, %v1971
      %v2017 = vadd.f32 %v1887, %v1974
      %v2018 = vadd.f32 %v1888, %v1976
      %v2019 = vadd.f32 %v1889, %v1979
      %v2020 = vadd.f32 %v1890, %v1981
      %v2021 = vadd.f32 %v1891, %v1984
      %v2022 = vadd.f32 %v1892, %v1986
      %v2023 = vadd.f32 %v1893, %v1989
      %v2024 = vadd.f32 %v1894, %v1991
      %v2025 = vld [vmem:[%s4] sm:$0x1]
      %v2027 = vperm.slane %v2025, 0
      %v2029 = vadd.f32 %v1993, %v2027
      %v2030 = vadd.f32 %v1994, %v2027
      %v2031 = vadd.f32 %v1995, %v2027
      %v2032 = vadd.f32 %v1996, %v2027
      %v2033 = vadd.f32 %v1997, %v2027
      %v2034 = vadd.f32 %v1998, %v2027
      %v2035 = vadd.f32 %v1999, %v2027
      %v2036 = vadd.f32 %v2000, %v2027
      %v2037 = vadd.f32 %v2001, %v2027
      %v2038 = vadd.f32 %v2002, %v2027
      %v2039 = vadd.f32 %v2003, %v2027
      %v2040 = vadd.f32 %v2004, %v2027
      %v2041 = vadd.f32 %v2005, %v2027
      %v2042 = vadd.f32 %v2006, %v2027
      %v2043 = vadd.f32 %v2007, %v2027
      %v2044 = vadd.f32 %v2008, %v2027
      %v2045 = vadd.f32 %v2009, %v2027
      %v2046 = vadd.f32 %v2010, %v2027
      %v2047 = vadd.f32 %v2011, %v2027
      %v2048 = vadd.f32 %v2012, %v2027
      %v2049 = vadd.f32 %v2013, %v2027
      %v2050 = vadd.f32 %v2014, %v2027
      %v2051 = vadd.f32 %v2015, %v2027
      %v2052 = vadd.f32 %v2016, %v2027
      %v2053 = vadd.f32 %v2017, %v2027
      %v2054 = vadd.f32 %v2018, %v2027
      %v2055 = vadd.f32 %v2019, %v2027
      %v2056 = vadd.f32 %v2020, %v2027
      %v2057 = vadd.f32 %v2021, %v2027
      %v2058 = vadd.f32 %v2022, %v2027
      %v2059 = vadd.f32 %v2023, %v2027
      %v2060 = vadd.f32 %v2024, %v2027
      %v2061 = vmax.f32 %v2029, 0.0
      %v2062 = vmax.f32 %v2030, 0.0
      %v2063 = vmax.f32 %v2031, 0.0
      %v2064 = vmax.f32 %v2032, 0.0
      %v2065 = vmax.f32 %v2033, 0.0
      %v2066 = vmax.f32 %v2034, 0.0
      %v2067 = vmax.f32 %v2035, 0.0
      %v2068 = vmax.f32 %v2036, 0.0
      %v2069 = vmax.f32 %v2037, 0.0
      %v2070 = vmax.f32 %v2038, 0.0
      %v2071 = vmax.f32 %v2039, 0.0
      %v2072 = vmax.f32 %v2040, 0.0
      %v2073 = vmax.f32 %v2041, 0.0
      %v2074 = vmax.f32 %v2042, 0.0
      %v2075 = vmax.f32 %v2043, 0.0
      %v2076 = vmax.f32 %v2044, 0.0
      %v2077 = vmax.f32 %v2045, 0.0
      %v2078 = vmax.f32 %v2046, 0.0
      %v2079 = vmax.f32 %v2047, 0.0
      %v2080 = vmax.f32 %v2048, 0.0
      %v2081 = vmax.f32 %v2049, 0.0
      %v2082 = vmax.f32 %v2050, 0.0
      %v2083 = vmax.f32 %v2051, 0.0
      %v2084 = vmax.f32 %v2052, 0.0
      %v2085 = vmax.f32 %v2053, 0.0
      %v2086 = vmax.f32 %v2054, 0.0
      %v2087 = vmax.f32 %v2055, 0.0
      %v2088 = vmax.f32 %v2056, 0.0
      %v2089 = vmax.f32 %v2057, 0.0
      %v2090 = vmax.f32 %v2058, 0.0
      %v2091 = vmax.f32 %v2059, 0.0
      %v2092 = vmax.f32 %v2060, 0.0
      %v2093 = vpack.c.bf16 %v2062, %v2061
      %v2094 = vpack.c.bf16 %v2064, %v2063
      %v2095 = vpack.c.bf16 %v2066, %v2065
      %v2096 = vpack.c.bf16 %v2068, %v2067
      %v2097 = vpack.c.bf16 %v2070, %v2069
      %v2098 = vpack.c.bf16 %v2072, %v2071
      %v2099 = vpack.c.bf16 %v2074, %v2073
      %v2100 = vpack.c.bf16 %v2076, %v2075
      %v2101 = vpack.c.bf16 %v2078, %v2077
      %v2102 = vpack.c.bf16 %v2080, %v2079
      %v2103 = vpack.c.bf16 %v2082, %v2081
      %v2104 = vpack.c.bf16 %v2084, %v2083
      %v2105 = vpack.c.bf16 %v2086, %v2085
      %v2106 = vpack.c.bf16 %v2088, %v2087
      %v2107 = vpack.c.bf16 %v2090, %v2089
      %v2108 = vpack.c.bf16 %v2092, %v2091
      %v2109 = vld [vmem:[%s5] sm:$0x3]
      %v2110 = vld [vmem:[%s6] sm:$0x1]
      %v2112 = vperm.slane %v2110, 0
      %v2115 = vsel %vm510, %v2093, 0
      %v2118 = vsel %vm510, %v2094, 0
      %v2121 = vsel %vm510, %v2095, 0
      %v2124 = vsel %vm510, %v2096, 0
      %v2127 = vsel %vm510, %v2097, 0
      %v2130 = vsel %vm510, %v2098, 0
      %v2133 = vsel %vm510, %v2099, 0
      %v2136 = vsel %vm510, %v2100, 0
      %v2139 = vsel %vm510, %v2101, 0
      %v2142 = vsel %vm510, %v2102, 0
      %v2145 = vsel %vm510, %v2103, 0
      %v2148 = vsel %vm510, %v2104, 0
      %v2151 = vsel %vm510, %v2105, 0
      %v2154 = vsel %vm510, %v2106, 0
      %v2157 = vsel %vm510, %v2107, 0
      %v2160 = vsel %vm510, %v2108, 0
      %v2163 = vsel %vm822, %v2109, 0
      %2165 = vmatpush.bf16.msra.mxu0 0
      %2166 = vmatpush.bf16.msra.mxu0 0
      %2167 = vmatpush.bf16.msra.mxu0 0
      %2168 = vmatpush.bf16.msra.mxu0 0
      %2169 = vmatpush.bf16.msra.mxu0 0
      %2170 = vmatpush.bf16.msra.mxu0 0
      %2171 = vmatpush.bf16.msra.mxu0 0
      %2172 = vmatpush.bf16.msra.mxu0 %v2163
      %2173 = vmatmul.bf16.gmra.mxu0 %v2115
      %v2174 = vpop.f32.mrf.mxu0
      %v2175 = vadd.f32 %v2112, %v2174
      %v2176 = vpop.f32.mrf.mxu0
      %v2177 = vadd.f32 %v2112, %v2176
      %2178 = vmatmul.bf16.gmra.mxu0 %v2118
      %v2179 = vpop.f32.mrf.mxu0
      %v2180 = vadd.f32 %v2112, %v2179
      %v2181 = vpop.f32.mrf.mxu0
      %v2182 = vadd.f32 %v2112, %v2181
      %2183 = vmatmul.bf16.gmra.mxu0 %v2121
      %v2184 = vpop.f32.mrf.mxu0
      %v2185 = vadd.f32 %v2112, %v2184
      %v2186 = vpop.f32.mrf.mxu0
      %v2187 = vadd.f32 %v2112, %v2186
      %2188 = vmatmul.bf16.gmra.mxu0 %v2124
      %v2189 = vpop.f32.mrf.mxu0
      %v2190 = vadd.f32 %v2112, %v2189
      %v2191 = vpop.f32.mrf.mxu0
      %v2192 = vadd.f32 %v2112, %v2191
      %2193 = vmatmul.bf16.gmra.mxu0 %v2127
      %v2194 = vpop.f32.mrf.mxu0
      %v2195 = vadd.f32 %v2112, %v2194
      %v2196 = vpop.f32.mrf.mxu0
      %v2197 = vadd.f32 %v2112, %v2196
      %2198 = vmatmul.bf16.gmra.mxu0 %v2130
      %v2199 = vpop.f32.mrf.mxu0
      %v2200 = vadd.f32 %v2112, %v2199
      %v2201 = vpop.f32.mrf.mxu0
      %v2202 = vadd.f32 %v2112, %v2201
      %2203 = vmatmul.bf16.gmra.mxu0 %v2133
      %v2204 = vpop.f32.mrf.mxu0
      %v2205 = vadd.f32 %v2112, %v2204
      %v2206 = vpop.f32.mrf.mxu0
      %v2207 = vadd.f32 %v2112, %v2206
      %2208 = vmatmul.bf16.gmra.mxu0 %v2136
      %v2209 = vpop.f32.mrf.mxu0
      %v2210 = vadd.f32 %v2112, %v2209
      %v2211 = vpop.f32.mrf.mxu0
      %v2212 = vadd.f32 %v2112, %v2211
      %2213 = vmatmul.bf16.gmra.mxu0 %v2139
      %v2214 = vpop.f32.mrf.mxu0
      %v2215 = vadd.f32 %v2112, %v2214
      %v2216 = vpop.f32.mrf.mxu0
      %v2217 = vadd.f32 %v2112, %v2216
      %2218 = vmatmul.bf16.gmra.mxu0 %v2142
      %v2219 = vpop.f32.mrf.mxu0
      %v2220 = vadd.f32 %v2112, %v2219
      %v2221 = vpop.f32.mrf.mxu0
      %v2222 = vadd.f32 %v2112, %v2221
      %2223 = vmatmul.bf16.gmra.mxu0 %v2145
      %v2224 = vpop.f32.mrf.mxu0
      %v2225 = vadd.f32 %v2112, %v2224
      %v2226 = vpop.f32.mrf.mxu0
      %v2227 = vadd.f32 %v2112, %v2226
      %2228 = vmatmul.bf16.gmra.mxu0 %v2148
      %v2229 = vpop.f32.mrf.mxu0
      %v2230 = vadd.f32 %v2112, %v2229
      %v2231 = vpop.f32.mrf.mxu0
      %v2232 = vadd.f32 %v2112, %v2231
      %2233 = vmatmul.bf16.gmra.mxu0 %v2151
      %v2234 = vpop.f32.mrf.mxu0
      %v2235 = vadd.f32 %v2112, %v2234
      %v2236 = vpop.f32.mrf.mxu0
      %v2237 = vadd.f32 %v2112, %v2236
      %2238 = vmatmul.bf16.gmra.mxu0 %v2154
      %v2239 = vpop.f32.mrf.mxu0
      %v2240 = vadd.f32 %v2112, %v2239
      %v2241 = vpop.f32.mrf.mxu0
      %v2242 = vadd.f32 %v2112, %v2241
      %2243 = vmatmul.bf16.gmra.mxu0 %v2157
      %v2244 = vpop.f32.mrf.mxu0
      %v2245 = vadd.f32 %v2112, %v2244
      %v2246 = vpop.f32.mrf.mxu0
      %v2247 = vadd.f32 %v2112, %v2246
      %2248 = vmatmul.bf16.gmra.mxu0 %v2160
      %v2249 = vpop.f32.mrf.mxu0
      %v2250 = vadd.f32 %v2112, %v2249
      %v2251 = vpop.f32.mrf.mxu0
      %v2252 = vadd.f32 %v2112, %v2251
      %2253 = vdwg.mxu0
      %v2254 = vadd.f32 %v2175, %v280
      %v2255 = vadd.f32 %v2177, %v281
      %v2256 = vadd.f32 %v2180, %v282
      %v2257 = vadd.f32 %v2182, %v283
      %v2258 = vadd.f32 %v2185, %v284
      %v2259 = vadd.f32 %v2187, %v285
      %v2260 = vadd.f32 %v2190, %v286
      %v2261 = vadd.f32 %v2192, %v287
      %v2262 = vadd.f32 %v2195, %v288
      %v2263 = vadd.f32 %v2197, %v289
      %v2264 = vadd.f32 %v2200, %v290
      %v2265 = vadd.f32 %v2202, %v291
      %v2266 = vadd.f32 %v2205, %v292
      %v2267 = vadd.f32 %v2207, %v293
      %v2268 = vadd.f32 %v2210, %v294
      %v2269 = vadd.f32 %v2212, %v295
      %v2270 = vadd.f32 %v2215, %v296
      %v2271 = vadd.f32 %v2217, %v297
      %v2272 = vadd.f32 %v2220, %v298
      %v2273 = vadd.f32 %v2222, %v299
      %v2274 = vadd.f32 %v2225, %v300
      %v2275 = vadd.f32 %v2227, %v301
      %v2276 = vadd.f32 %v2230, %v302
      %v2277 = vadd.f32 %v2232, %v303
      %v2278 = vadd.f32 %v2235, %v304
      %v2279 = vadd.f32 %v2237, %v305
      %v2280 = vadd.f32 %v2240, %v306
      %v2281 = vadd.f32 %v2242, %v307
      %v2282 = vadd.f32 %v2245, %v308
      %v2283 = vadd.f32 %v2247, %v309
      %v2284 = vadd.f32 %v2250, %v310
      %v2285 = vadd.f32 %v2252, %v311
      %v2286 = vmax.f32 %v2254, 0.0
      %v2287 = vmax.f32 %v2255, 0.0
      %v2288 = vmax.f32 %v2256, 0.0
      %v2289 = vmax.f32 %v2257, 0.0
      %v2290 = vmax.f32 %v2258, 0.0
      %v2291 = vmax.f32 %v2259, 0.0
      %v2292 = vmax.f32 %v2260, 0.0
      %v2293 = vmax.f32 %v2261, 0.0
      %v2294 = vmax.f32 %v2262, 0.0
      %v2295 = vmax.f32 %v2263, 0.0
      %v2296 = vmax.f32 %v2264, 0.0
      %v2297 = vmax.f32 %v2265, 0.0
      %v2298 = vmax.f32 %v2266, 0.0
      %v2299 = vmax.f32 %v2267, 0.0
      %v2300 = vmax.f32 %v2268, 0.0
      %v2301 = vmax.f32 %v2269, 0.0
      %v2302 = vmax.f32 %v2270, 0.0
      %v2303 = vmax.f32 %v2271, 0.0
      %v2304 = vmax.f32 %v2272, 0.0
      %v2305 = vmax.f32 %v2273, 0.0
      %v2306 = vmax.f32 %v2274, 0.0
      %v2307 = vmax.f32 %v2275, 0.0
      %v2308 = vmax.f32 %v2276, 0.0
      %v2309 = vmax.f32 %v2277, 0.0
      %v2310 = vmax.f32 %v2278, 0.0
      %v2311 = vmax.f32 %v2279, 0.0
      %v2312 = vmax.f32 %v2280, 0.0
      %v2313 = vmax.f32 %v2281, 0.0
      %v2314 = vmax.f32 %v2282, 0.0
      %v2315 = vmax.f32 %v2283, 0.0
      %v2316 = vmax.f32 %v2284, 0.0
      %v2317 = vmax.f32 %v2285, 0.0
      %2318 = vst.msk [vmem:[%s278] sm:$0xff] %vm340, %v2286
      %2319 = vst.msk [vmem:[%s278 + $0x8] sm:$0xff] %vm340, %v2287
      %2320 = vst.msk [vmem:[%s278 + $0x10] sm:$0xff] %vm340, %v2288
      %2321 = vst.msk [vmem:[%s278 + $0x18] sm:$0xff] %vm340, %v2289
      %2322 = vst.msk [vmem:[%s278 + $0x20] sm:$0xff] %vm340, %v2290
      %2323 = vst.msk [vmem:[%s278 + $0x28] sm:$0xff] %vm340, %v2291
      %2324 = vst.msk [vmem:[%s278 + $0x30] sm:$0xff] %vm340, %v2292
      %2325 = vst.msk [vmem:[%s278 + $0x38] sm:$0xff] %vm340, %v2293
      %2326 = vst.msk [vmem:[%s278 + $0x40] sm:$0xff] %vm340, %v2294
      %2327 = vst.msk [vmem:[%s278 + $0x48] sm:$0xff] %vm340, %v2295
      %2328 = vst.msk [vmem:[%s278 + $0x50] sm:$0xff] %vm340, %v2296
      %2329 = vst.msk [vmem:[%s278 + $0x58] sm:$0xff] %vm340, %v2297
      %2330 = vst.msk [vmem:[%s278 + $0x60] sm:$0xff] %vm340, %v2298
      %2331 = vst.msk [vmem:[%s278 + $0x68] sm:$0xff] %vm340, %v2299
      %2332 = vst.msk [vmem:[%s278 + $0x70] sm:$0xff] %vm340, %v2300
      %2333 = vst.msk [vmem:[%s278 + $0x78] sm:$0xff] %vm340, %v2301
      %2334 = vst.msk [vmem:[%s278 + $0x80] sm:$0xff] %vm340, %v2302
      %2335 = vst.msk [vmem:[%s278 + $0x88] sm:$0xff] %vm340, %v2303
      %2336 = vst.msk [vmem:[%s278 + $0x90] sm:$0xff] %vm340, %v2304
      %2337 = vst.msk [vmem:[%s278 + $0x98] sm:$0xff] %vm340, %v2305
      %2338 = vst.msk [vmem:[%s278 + $0xa0] sm:$0xff] %vm340, %v2306
      %2339 = vst.msk [vmem:[%s278 + $0xa8] sm:$0xff] %vm340, %v2307
      %2340 = vst.msk [vmem:[%s278 + $0xb0] sm:$0xff] %vm340, %v2308
      %2341 = vst.msk [vmem:[%s278 + $0xb8] sm:$0xff] %vm340, %v2309
      %2342 = vst.msk [vmem:[%s278 + $0xc0] sm:$0xff] %vm340, %v2310
      %2343 = vst.msk [vmem:[%s278 + $0xc8] sm:$0xff] %vm340, %v2311
      %2344 = vst.msk [vmem:[%s278 + $0xd0] sm:$0xff] %vm340, %v2312
      %2345 = vst.msk [vmem:[%s278 + $0xd8] sm:$0xff] %vm340, %v2313
      %2346 = vst.msk [vmem:[%s278 + $0xe0] sm:$0xff] %vm340, %v2314
      %2347 = vst.msk [vmem:[%s278 + $0xe8] sm:$0xff] %vm340, %v2315
      %2348 = vst.msk [vmem:[%s278 + $0xf0] sm:$0xff] %vm340, %v2316
      %2349 = vst.msk [vmem:[%s278 + $0xf8] sm:$0xff] %vm340, %v2317
      %p2350 = scmp.lt.s32.totalorder %s18, 1
      %s2351 = scalar_select %p2350, %s18, 1
      %s2352 = smul.addr %s2351, 32
      %s2353 = smul.addr %s2352, 8
      %s2354 = scalar_lea.vmem %s7, %s2353
      // Predicated region
      $region49: #{bottleneck_forward.1} parent=47 // pred_check
        %p2355 = pneg %p188
      $region50: #{bottleneck_forward.1} parent=47 // pred_check_branch
        %2357 = sbr.rel (%p2355) target = $region52
      $region51: #{bottleneck_forward.1} parent=47 // pred_region
        _
      $region52: #{bottleneck_forward.1} parent=47 // pred_fallthru
        _
    $region48: #{bottleneck_forward.1} parent=5 // pred_fallthru
      _
    %p2358 = scmp.le.s32.totalorder 2, %s13
    // Predicated region
    $region53: #{bottleneck_forward.1} parent=5 // pred_check
      %p2359 = pneg %p2358
    $region54: #{bottleneck_forward.1} parent=5 // pred_check_branch
      %2361 = sbr.rel (%p2359) target = $region56
    $region55: #{bottleneck_forward.1} parent=5 // pred_region
      %s2362 = ssub.s32 %s13, 2
      // Predicated region
      $region57: #{bottleneck_forward.1} parent=55 // pred_check
        %p2363 = pneg %p194
      $region58: #{bottleneck_forward.1} parent=55 // pred_check_branch
        %2365 = sbr.rel (%p2363) target = $region60
      $region59: #{bottleneck_forward.1} parent=55 // pred_region
        %p2366 = scmp.lt.s32.totalorder %s19, 1
        %s2367 = scalar_select %p2366, %s19, 1
        %s2368 = smul.addr %s2367, 32
        %s2369 = smul.addr %s2368, 8
        %s2370 = scalar_lea.vmem %s7, %s2369
      $region60: #{bottleneck_forward.1} parent=55 // pred_fallthru
        _
    $region56: #{bottleneck_forward.1} parent=5 // pred_fallthru
      _
  $region6: #{bottleneck_forward.1} parent=0 // loop_footer
    %s17 = sadd.s32 1, %s13
  $region7: #{bottleneck_forward.1} parent=0 // loop_footer_branch
    %12 = sbr.rel target = $region3
  $region8: #{bottleneck_forward.1} parent=0 // loop_exit
    _

</llo_original>
